<compile_context>
chip_gen: v5e
topology: v5e:2x2
jax: 0.10.0
libtpu: 0.0.40
codegen_flags: <defaults>
</compile_context>

<pallas_src>
import functools
import math

import jax
import jax.numpy as jnp
from jax import lax
from jax.experimental import pallas as pl
from jax.experimental.pallas import tpu as pltpu

INPUT_SIZE = 44
SEQ_LEN = 64
GRU_IN = 7          # the module always feeds channels [:7] to the GRU


def _cnn_block_kernel(xpad_ref, xcnn_ref, xproj_ref, wh_ref, bhn_ref,
                      w1t_ref, b1_ref, wct_ref, bout_ref, *rest,
                      N, L, H, K, dil, pad, PAD, LC, latent, C_out, CH,
                      has_resample):
    """Fused CNNBlock forward (single program, everything VMEM-resident).

    Padded-row layout: each batch occupies Lp = L + 2*PAD rows (PAD zero guard rows on
    each side) plus PAD extra guard rows at the very top/bottom of the buffer, so every
    conv tap is a static row-shifted slice and "same" zero padding comes from the guards.
    Real data of batch n lives at rows [n*Lp + 2*PAD, +L).

      xpad_ref  : (RP, C_in)   all input channels            (padded rows)
      xcnn_ref  : (RP, C1)     channels 7: (cnn1 input), lane offset 0
      xproj_ref : (L*N, 3H)    GRU input projection, row = t*N + n, [r_x | z_x | n_x]
      wh_ref    : (H, 3H)      [W_hr^T | W_hz^T | W_hn^T]
      bhn_ref   : (1, H)       b_hn (only recurrent bias that cannot be folded)
      w1t_ref   : (K, C1, LC)         cnn1 per-tap weights
      wct_ref   : (K, latent, C_out)  final-conv per-tap weights, cols = [cnn1 | gru]
      wrt_ref   : (3, C_in, C_out)    resample per-tap weights (only if has_resample)
      o_ref     : (N*L, C_out) output rows, row = n*L + l
      gru_ref   : (L, N*H)     scratch: ReLU'd GRU outputs, row = time step
      xcat_ref  : (RP, latent) scratch: [cnn1 | gru] in padded-row layout
    """
    if has_resample:
        wrt_ref, o_ref, gru_ref, xcat_ref = rest
    else:
        o_ref, gru_ref, xcat_ref = rest

    f32 = jnp.float32
    Lp = L + 2 * PAD
    RO = N * Lp                        # rows of every conv output (incl. gap garbage)

    def tap(ref, k, d_, p_):
        # rows read by conv tap k (offset k*d - p) in the padded-row layout
        start = PAD + k * d_ - p_      # static, >= 0 because PAD >= p
        return ref[start:start + RO, :]

    # ---- cnn1 branch: K accumulated MXU dots over lane-dense shifted slices ----
    out1 = jnp.dot(tap(xcnn_ref, 0, dil, pad), w1t_ref[0],
                   preferred_element_type=f32)
    for k in range(1, K):
        out1 += jnp.dot(tap(xcnn_ref, k, dil, pad), w1t_ref[k],
                        preferred_element_type=f32)
    out1 = jnp.maximum(out1 + b1_ref[...], 0.0)        # (RO, LC); gap rows are garbage

    # x_cat: guards/gaps must be zero, so zero-init and copy only the real rows of each
    # batch (sublane-aligned (L, .) stores).
    xcat_ref[...] = jnp.zeros(xcat_ref.shape, f32)
    for nb in range(N):
        src = nb * Lp + PAD                            # first real row, conv-output space
        dst = nb * Lp + 2 * PAD                        # first real row, padded-input space
        xcat_ref[dst:dst + L, 0:LC] = out1[src:src + L, :]

    # ---- GRU recurrence: VPU-only per-step update, chunked aligned output stores ----
    wh = wh_ref[...]                                   # (H, 3H), hoisted out of the loop
    wh_rows = [jnp.broadcast_to(wh[j:j + 1, :], (N, 3 * H)) for j in range(H)]
    bhn = jnp.broadcast_to(bhn_ref[...], (N, H))

    def chunk(c, h):
        base = pl.multiple_of(c * (CH * N), CH * N)
        xpc = xproj_ref[pl.ds(base, CH * N), :]        # one aligned (CH*N, 3H) load
        outs = []
        for i in range(CH):                            # unrolled serial steps
            xs = xpc[i * N:(i + 1) * N, :]             # (N, 3H) precomputed x-projection
            hp = h[:, 0:1] * wh_rows[0]                # h @ W_h as H VPU madds
            for j in range(1, H):
                hp = hp + h[:, j:j + 1] * wh_rows[j]
            r = jax.nn.sigmoid(xs[:, 0:H] + hp[:, 0:H])
            z = jax.nn.sigmoid(xs[:, H:2 * H] + hp[:, H:2 * H])
            n = jnp.tanh(xs[:, 2 * H:3 * H] + r * (hp[:, 2 * H:3 * H] + bhn))
            h = (1.0 - z) * n + z * h                  # hidden state carries pre-ReLU
            h_relu = jnp.maximum(h, 0.0)
            outs.append(jnp.concatenate([h_relu[nn:nn + 1, :] for nn in range(N)],
                                        axis=1))       # (1, N*H)
        gru_ref[pl.ds(pl.multiple_of(c * CH, CH), CH), :] = jnp.concatenate(outs, axis=0)
        return h

    lax.fori_loop(0, L // CH, chunk, jnp.zeros((N, H), f32))

    for nb in range(N):
        dst = nb * Lp + 2 * PAD
        xcat_ref[dst:dst + L, LC:latent] = gru_ref[:, nb * H:(nb + 1) * H]

    # ---- final conv + fused resample conv / identity residual ----
    acc = jnp.dot(tap(xcat_ref, 0, dil, pad), wct_ref[0], preferred_element_type=f32)
    for k in range(1, K):
        acc += jnp.dot(tap(xcat_ref, k, dil, pad), wct_ref[k],
                       preferred_element_type=f32)
    if has_resample:
        for j in range(3):                             # resample: K=3, d=1, p=1
            acc += jnp.dot(tap(xpad_ref, j, 1, 1), wrt_ref[j],
                           preferred_element_type=f32)
    else:
        acc += xpad_ref[PAD:PAD + RO, :]               # identity residual (C_in == C_out)
    acc += bout_ref[...]                               # bc (+ br) combined in wrapper

    for nb in range(N):
        src = nb * Lp + PAD
        o_ref[nb * L:(nb + 1) * L, :] = jnp.maximum(acc[src:src + L, :], 0.0)


def cnn_block_forward(params, x, *, kernel_size, dilation_size):
    """x: (N, C_in, L) NCL like PyTorch -> (N, C_out, L)."""
    N, C_in, L = x.shape
    K = int(kernel_size)
    d = int(dilation_size)
    p = (d * (K - 1)) >> 1
    assert 2 * p == d * (K - 1), "module only works for 'same'-length convs"

    w_ih, w_hh, b_ih, b_hh = params["gru"]
    H = w_hh.shape[1]
    w1, b1 = params["cnn1"]
    wc, bc = params["cnn"]
    LC = w1.shape[0]                   # latent_cnn
    latent = LC + H                    # latent_size
    C_out = wc.shape[0]
    has_resample = params["resample"] is not None
    if not has_resample:
        assert C_in == C_out, "identity residual requires in_channels == out_channels"

    # per-batch zero guard, rounded up to a sublane multiple so every real-row
    # read/write in the kernel is 8-aligned
    PAD = max(p, 1)
    PAD = ((PAD + 7) // 8) * 8
    Lp = L + 2 * PAD
    RP = N * Lp + 2 * PAD

    x_f32 = x.astype(jnp.float32)
    x_nlc = jnp.transpose(x_f32, (0, 2, 1))                          # (N, L, C_in)
    x_pad = jnp.pad(x_nlc, ((0, 0), (PAD, PAD), (0, 0))).reshape(N * Lp, C_in)
    x_pad = jnp.pad(x_pad, ((PAD, PAD), (0, 0)))                     # (RP, C_in)
    xc_pad = x_pad[:, GRU_IN:]                                       # (RP, C1), lane 0

    # ---- GRU: hoist the input projection out of the serial loop (one tiny matmul) ----
    wx = jnp.concatenate([w_ih[:H].T, w_ih[H:2 * H].T, w_ih[2 * H:].T], axis=1)  # (7,3H)
    bx = jnp.concatenate([b_ih[:H] + b_hh[:H],
                          b_ih[H:2 * H] + b_hh[H:2 * H],
                          b_ih[2 * H:]]).reshape(1, 3 * H)
    xg = jnp.transpose(x_f32[:, :GRU_IN, :], (2, 0, 1)).reshape(L * N, GRU_IN)
    xproj = jnp.dot(xg, wx, precision=lax.Precision.HIGHEST) + bx    # (L*N, 3H)

    wh = jnp.concatenate([w_hh[:H].T, w_hh[H:2 * H].T, w_hh[2 * H:].T], axis=1)  # (H,3H)
    bhn = b_hh[2 * H:].reshape(1, H)

    # ---- per-tap conv weights: (tap, C_in_conv, C_out_conv) ----
    w1t = jnp.transpose(w1, (2, 1, 0))                               # (K, C1, LC)
    wc_perm = jnp.concatenate([wc[:, H:, :], wc[:, :H, :]], axis=1)  # cols = [cnn1|gru]
    wct = jnp.transpose(wc_perm, (2, 1, 0))                          # (K, latent, C_out)

    bout = bc
    args = [x_pad, xc_pad, xproj, wh, bhn, w1t, b1.reshape(1, LC), wct]
    if has_resample:
        wr, br = params["resample"]
        bout = bc + br
    args.append(bout.reshape(1, C_out))
    if has_resample:
        args.append(jnp.transpose(wr, (2, 1, 0)))                    # (3, C_in, C_out)

    CH = 8                              # serial steps per chunk (sublane-aligned flush)
    while L % CH:
        CH //= 2

    kernel = functools.partial(
        _cnn_block_kernel, N=N, L=L, H=H, K=K, dil=d, pad=p, PAD=PAD,
        LC=LC, latent=latent, C_out=C_out, CH=CH, has_resample=has_resample)

    vmem = pl.BlockSpec(memory_space=pltpu.MemorySpace.VMEM)
    out_rows = pl.pallas_call(
        kernel,
        out_shape=jax.ShapeDtypeStruct((N * L, C_out), jnp.float32),
        in_specs=[vmem] * len(args),
        out_specs=vmem,
        scratch_shapes=[pltpu.VMEM((L, N * H), jnp.float32),         # ReLU'd GRU outputs
                        pltpu.VMEM((RP, latent), jnp.float32)],      # [cnn1 | gru] padded
    )(*args)
    return jnp.transpose(out_rows.reshape(N, L, C_out), (0, 2, 1))


def init_params(key, in_channels, out_channels, kernel_size):
    latent_size = (in_channels + out_channels) >> 1
    latent_gru = math.floor(latent_size * 7 / INPUT_SIZE)
    latent_cnn = latent_size - latent_gru
    ks = jax.random.split(key, 8)

    def conv_init(k, c_out, c_in, ksz):
        # kaiming_normal_ (gain('conv1d')=1, fan_in=c_in*ksz); bias zero-init.
        std = 1.0 / math.sqrt(c_in * ksz)
        w = std * jax.random.normal(k, (c_out, c_in, ksz), jnp.float32)
        return w, jnp.zeros((c_out,), jnp.float32)

    h = latent_gru
    stdv = 1.0 / math.sqrt(h)
    gru = (
        jax.random.uniform(ks[0], (3 * h, GRU_IN), jnp.float32, -stdv, stdv),  # w_ih
        jax.random.uniform(ks[1], (3 * h, h), jnp.float32, -stdv, stdv),       # w_hh
        jax.random.uniform(ks[2], (3 * h,), jnp.float32, -stdv, stdv),         # b_ih
        jax.random.uniform(ks[3], (3 * h,), jnp.float32, -stdv, stdv),         # b_hh
    )
    return {
        "gru": gru,
        "cnn1": conv_init(ks[4], latent_cnn, in_channels - GRU_IN, kernel_size),
        "cnn": conv_init(ks[5], out_channels, latent_size, kernel_size),
        "resample": (conv_init(ks[6], out_channels, in_channels, 3)
                     if in_channels != out_channels else None),
    }


if __name__ == "__main__":
    in_channels, out_channels, kernel_size, dilation_size = 16, 24, 3, 2
    N, L = 2, SEQ_LEN

    key = jax.random.PRNGKey(0)
    kp, kx = jax.random.split(key)
    params = init_params(kp, in_channels, out_channels, kernel_size)
    x = jax.random.normal(kx, (N, in_channels, L), jnp.float32)

    fwd = jax.jit(functools.partial(cnn_block_forward,
                                    kernel_size=kernel_size,
                                    dilation_size=dilation_size))
    out = fwd(params, x)
    jax.block_until_ready(out)
    assert out.shape == (N, out_channels, L), out.shape
    assert bool(jnp.all(jnp.isfinite(out)))
    assert bool(jnp.all(out >= 0.0))  # final ReLU
    print("KERNEL_OK")
</pallas_src>

<mosaic_0001>
module attributes {stable_mosaic.version = 11 : i64} {
  func.func @_cnn_block_kernel(%arg0: memref<176x16xf32, #tpu.memory_space<vmem>>, %arg1: memref<176x9xf32, #tpu.memory_space<vmem>>, %arg2: memref<128x9xf32, #tpu.memory_space<vmem>>, %arg3: memref<3x9xf32, #tpu.memory_space<vmem>>, %arg4: memref<1x3xf32, #tpu.memory_space<vmem>>, %arg5: memref<3x9x17xf32, #tpu.memory_space<vmem>>, %arg6: memref<1x17xf32, #tpu.memory_space<vmem>>, %arg7: memref<3x20x24xf32, #tpu.memory_space<vmem>>, %arg8: memref<1x24xf32, #tpu.memory_space<vmem>>, %arg9: memref<3x16x24xf32, #tpu.memory_space<vmem>>, %arg10: memref<128x24xf32, #tpu.memory_space<vmem>>, %arg11: memref<64x6xf32, #tpu.memory_space<vmem>>, %arg12: memref<176x20xf32, #tpu.memory_space<vmem>>) attributes {dimension_semantics = [], scalar_prefetch = 0 : i64, scratch_operands = 2 : i64, tpu.core_type = #tpu.core_type<tc>} {
    %c6 = arith.constant 6 : index
    %c0 = arith.constant 0 : index
    %0 = vector.load %arg1[%c6, %c0] : memref<176x9xf32, #tpu.memory_space<vmem>>, vector<160x9xf32>
    %c0_0 = arith.constant 0 : index
    %c0_1 = arith.constant 0 : index
    %c0_2 = arith.constant 0 : index
    %1 = vector.load %arg5[%c0_0, %c0_1, %c0_2] : memref<3x9x17xf32, #tpu.memory_space<vmem>>, vector<1x9x17xf32>
    %2 = vector.shape_cast %1 : vector<1x9x17xf32> to vector<9x17xf32>
    %cst = arith.constant dense<0.000000e+00> : vector<160x17xf32>
    %3 = tpu.matmul %0, %2, %cst {dimension_numbers = #tpu.dot_dimension_numbers<[1], [0], [0], [1], [0, 0, 1, 1], [], []>} : vector<160x9xf32>, vector<9x17xf32>, vector<160x17xf32> -> vector<160x17xf32>
    %c8 = arith.constant 8 : index
    %c0_3 = arith.constant 0 : index
    %4 = vector.load %arg1[%c8, %c0_3] : memref<176x9xf32, #tpu.memory_space<vmem>>, vector<160x9xf32>
    %c1 = arith.constant 1 : index
    %c0_4 = arith.constant 0 : index
    %c0_5 = arith.constant 0 : index
    %5 = vector.load %arg5[%c1, %c0_4, %c0_5] : memref<3x9x17xf32, #tpu.memory_space<vmem>>, vector<1x9x17xf32>
    %6 = vector.shape_cast %5 : vector<1x9x17xf32> to vector<9x17xf32>
    %cst_6 = arith.constant dense<0.000000e+00> : vector<160x17xf32>
    %7 = tpu.matmul %4, %6, %cst_6 {dimension_numbers = #tpu.dot_dimension_numbers<[1], [0], [0], [1], [0, 0, 1, 1], [], []>} : vector<160x9xf32>, vector<9x17xf32>, vector<160x17xf32> -> vector<160x17xf32>
    %8 = arith.addf %3, %7 : vector<160x17xf32>
    %c10 = arith.constant 10 : index
    %c0_7 = arith.constant 0 : index
    %9 = vector.load %arg1[%c10, %c0_7] : memref<176x9xf32, #tpu.memory_space<vmem>>, vector<160x9xf32>
    %c2 = arith.constant 2 : index
    %c0_8 = arith.constant 0 : index
    %c0_9 = arith.constant 0 : index
    %10 = vector.load %arg5[%c2, %c0_8, %c0_9] : memref<3x9x17xf32, #tpu.memory_space<vmem>>, vector<1x9x17xf32>
    %11 = vector.shape_cast %10 : vector<1x9x17xf32> to vector<9x17xf32>
    %cst_10 = arith.constant dense<0.000000e+00> : vector<160x17xf32>
    %12 = tpu.matmul %9, %11, %cst_10 {dimension_numbers = #tpu.dot_dimension_numbers<[1], [0], [0], [1], [0, 0, 1, 1], [], []>} : vector<160x9xf32>, vector<9x17xf32>, vector<160x17xf32> -> vector<160x17xf32>
    %13 = arith.addf %8, %12 : vector<160x17xf32>
    %c0_11 = arith.constant 0 : index
    %c0_12 = arith.constant 0 : index
    %14 = vector.load %arg6[%c0_11, %c0_12] : memref<1x17xf32, #tpu.memory_space<vmem>>, vector<1x17xf32>
    %15 = vector.broadcast %14 : vector<1x17xf32> to vector<160x17xf32>
    %16 = arith.addf %13, %15 : vector<160x17xf32>
    %cst_13 = arith.constant 0.000000e+00 : f32
    %17 = vector.broadcast %cst_13 : f32 to vector<160x17xf32>
    %18 = arith.maximumf %16, %17 : vector<160x17xf32>
    %cst_14 = arith.constant 0.000000e+00 : f32
    %19 = vector.broadcast %cst_14 : f32 to vector<176x20xf32>
    %c0_15 = arith.constant 0 : index
    %c0_16 = arith.constant 0 : index
    %20 = vector.load %arg12[%c0_15, %c0_16] : memref<176x20xf32, #tpu.memory_space<vmem>>, vector<176x20xf32>
    tpu.vector_store %arg12[%c0_15, %c0_16], %19 {strides = array<i32>} : memref<176x20xf32, #tpu.memory_space<vmem>>, vector<176x20xf32>,
    %21 = vector.extract_strided_slice %18 {offsets = [8, 0], sizes = [64, 17], strides = [1, 1]} : vector<160x17xf32> to vector<64x17xf32>
    %c16 = arith.constant 16 : index
    %c0_17 = arith.constant 0 : index
    %22 = vector.load %arg12[%c16, %c0_17] : memref<176x20xf32, #tpu.memory_space<vmem>>, vector<64x17xf32>
    tpu.vector_store %arg12[%c16, %c0_17], %21 {strides = array<i32>} : memref<176x20xf32, #tpu.memory_space<vmem>>, vector<64x17xf32>,
    %23 = vector.extract_strided_slice %18 {offsets = [88, 0], sizes = [64, 17], strides = [1, 1]} : vector<160x17xf32> to vector<64x17xf32>
    %c96 = arith.constant 96 : index
    %c0_18 = arith.constant 0 : index
    %24 = vector.load %arg12[%c96, %c0_18] : memref<176x20xf32, #tpu.memory_space<vmem>>, vector<64x17xf32>
    tpu.vector_store %arg12[%c96, %c0_18], %23 {strides = array<i32>} : memref<176x20xf32, #tpu.memory_space<vmem>>, vector<64x17xf32>,
    %c0_19 = arith.constant 0 : index
    %c0_20 = arith.constant 0 : index
    %25 = vector.load %arg3[%c0_19, %c0_20] : memref<3x9xf32, #tpu.memory_space<vmem>>, vector<3x9xf32>
    %26 = vector.extract_strided_slice %25 {offsets = [0, 0], sizes = [1, 9], strides = [1, 1]} : vector<3x9xf32> to vector<1x9xf32>
    %27 = vector.shape_cast %26 : vector<1x9xf32> to vector<1x9xf32>
    %28 = vector.broadcast %27 : vector<1x9xf32> to vector<2x9xf32>
    %29 = vector.extract_strided_slice %25 {offsets = [1, 0], sizes = [1, 9], strides = [1, 1]} : vector<3x9xf32> to vector<1x9xf32>
    %30 = vector.shape_cast %29 : vector<1x9xf32> to vector<1x9xf32>
    %31 = vector.broadcast %30 : vector<1x9xf32> to vector<2x9xf32>
    %32 = vector.extract_strided_slice %25 {offsets = [2, 0], sizes = [1, 9], strides = [1, 1]} : vector<3x9xf32> to vector<1x9xf32>
    %33 = vector.shape_cast %32 : vector<1x9xf32> to vector<1x9xf32>
    %34 = vector.broadcast %33 : vector<1x9xf32> to vector<2x9xf32>
    %c0_21 = arith.constant 0 : index
    %c0_22 = arith.constant 0 : index
    %35 = vector.load %arg4[%c0_21, %c0_22] : memref<1x3xf32, #tpu.memory_space<vmem>>, vector<1x3xf32>
    %36 = vector.shape_cast %35 : vector<1x3xf32> to vector<1x3xf32>
    %37 = vector.broadcast %36 : vector<1x3xf32> to vector<2x3xf32>
    %cst_23 = arith.constant 0.000000e+00 : f32
    %38 = vector.broadcast %cst_23 : f32 to vector<2x3xf32>
    %c0_i32 = arith.constant 0 : i32
    %c8_i32 = arith.constant 8 : i32
    %39 = arith.addi %c0_i32, %c8_i32 : i32
    %c1_i32 = arith.constant 1 : i32
    %40 = scf.for %arg13 = %c0_i32 to %39 step %c1_i32 iter_args(%arg14 = %38) -> (vector<2x3xf32>)  : i32 {
      %c16_i32 = arith.constant 16 : i32
      %85 = arith.muli %arg13, %c16_i32 : i32
      %86 = tpu.assume_multiple %85, 16 : i32
      %87 = arith.index_cast %86 : i32 to index
      %c0_72 = arith.constant 0 : index
      %88 = vector.load %arg2[%87, %c0_72] : memref<128x9xf32, #tpu.memory_space<vmem>>, vector<16x9xf32>
      %89 = vector.extract_strided_slice %88 {offsets = [0, 0], sizes = [2, 9], strides = [1, 1]} : vector<16x9xf32> to vector<2x9xf32>
      %90 = vector.extract_strided_slice %arg14 {offsets = [0, 0], sizes = [2, 1], strides = [1, 1]} : vector<2x3xf32> to vector<2x1xf32>
      %91 = vector.broadcast %90 : vector<2x1xf32> to vector<2x9xf32>
      %92 = arith.mulf %91, %28 : vector<2x9xf32>
      %93 = vector.extract_strided_slice %arg14 {offsets = [0, 1], sizes = [2, 1], strides = [1, 1]} : vector<2x3xf32> to vector<2x1xf32>
      %94 = vector.broadcast %93 : vector<2x1xf32> to vector<2x9xf32>
      %95 = arith.mulf %94, %31 : vector<2x9xf32>
      %96 = arith.addf %92, %95 : vector<2x9xf32>
      %97 = vector.extract_strided_slice %arg14 {offsets = [0, 2], sizes = [2, 1], strides = [1, 1]} : vector<2x3xf32> to vector<2x1xf32>
      %98 = vector.broadcast %97 : vector<2x1xf32> to vector<2x9xf32>
      %99 = arith.mulf %98, %34 : vector<2x9xf32>
      %100 = arith.addf %96, %99 : vector<2x9xf32>
      %101 = vector.extract_strided_slice %89 {offsets = [0, 0], sizes = [2, 3], strides = [1, 1]} : vector<2x9xf32> to vector<2x3xf32>
      %102 = vector.extract_strided_slice %100 {offsets = [0, 0], sizes = [2, 3], strides = [1, 1]} : vector<2x9xf32> to vector<2x3xf32>
      %103 = arith.addf %101, %102 : vector<2x3xf32>
      %104 = arith.negf %103 : vector<2x3xf32>
      %105 = math.exp %104 : vector<2x3xf32>
      %cst_73 = arith.constant 1.000000e+00 : f32
      %106 = vector.broadcast %cst_73 : f32 to vector<2x3xf32>
      %107 = arith.addf %106, %105 : vector<2x3xf32>
      %108 = arith.divf %106, %107 : vector<2x3xf32>
      %109 = vector.extract_strided_slice %89 {offsets = [0, 3], sizes = [2, 3], strides = [1, 1]} : vector<2x9xf32> to vector<2x3xf32>
      %110 = vector.extract_strided_slice %100 {offsets = [0, 3], sizes = [2, 3], strides = [1, 1]} : vector<2x9xf32> to vector<2x3xf32>
      %111 = arith.addf %109, %110 : vector<2x3xf32>
      %112 = arith.negf %111 : vector<2x3xf32>
      %113 = math.exp %112 : vector<2x3xf32>
      %cst_74 = arith.constant 1.000000e+00 : f32
      %114 = vector.broadcast %cst_74 : f32 to vector<2x3xf32>
      %115 = arith.addf %114, %113 : vector<2x3xf32>
      %116 = arith.divf %114, %115 : vector<2x3xf32>
      %117 = vector.extract_strided_slice %89 {offsets = [0, 6], sizes = [2, 3], strides = [1, 1]} : vector<2x9xf32> to vector<2x3xf32>
      %118 = vector.extract_strided_slice %100 {offsets = [0, 6], sizes = [2, 3], strides = [1, 1]} : vector<2x9xf32> to vector<2x3xf32>
      %119 = arith.addf %118, %37 : vector<2x3xf32>
      %120 = arith.mulf %108, %119 : vector<2x3xf32>
      %121 = arith.addf %117, %120 : vector<2x3xf32>
      %122 = math.tanh %121 : vector<2x3xf32>
      %cst_75 = arith.constant 1.000000e+00 : f32
      %123 = vector.broadcast %cst_75 : f32 to vector<2x3xf32>
      %124 = arith.subf %123, %116 : vector<2x3xf32>
      %125 = arith.mulf %124, %122 : vector<2x3xf32>
      %126 = arith.mulf %116, %arg14 : vector<2x3xf32>
      %127 = arith.addf %125, %126 : vector<2x3xf32>
      %cst_76 = arith.constant 0.000000e+00 : f32
      %128 = vector.broadcast %cst_76 : f32 to vector<2x3xf32>
      %129 = arith.maximumf %127, %128 : vector<2x3xf32>
      %130 = vector.extract_strided_slice %129 {offsets = [0, 0], sizes = [1, 3], strides = [1, 1]} : vector<2x3xf32> to vector<1x3xf32>
      %131 = vector.extract_strided_slice %129 {offsets = [1, 0], sizes = [1, 3], strides = [1, 1]} : vector<2x3xf32> to vector<1x3xf32>
      %132 = tpu.concatenate %130, %131 in 1 : vector<1x3xf32>, vector<1x3xf32> -> vector<1x6xf32>
      %133 = vector.extract_strided_slice %88 {offsets = [2, 0], sizes = [2, 9], strides = [1, 1]} : vector<16x9xf32> to vector<2x9xf32>
      %134 = vector.extract_strided_slice %127 {offsets = [0, 0], sizes = [2, 1], strides = [1, 1]} : vector<2x3xf32> to vector<2x1xf32>
      %135 = vector.broadcast %134 : vector<2x1xf32> to vector<2x9xf32>
      %136 = arith.mulf %135, %28 : vector<2x9xf32>
      %137 = vector.extract_strided_slice %127 {offsets = [0, 1], sizes = [2, 1], strides = [1, 1]} : vector<2x3xf32> to vector<2x1xf32>
      %138 = vector.broadcast %137 : vector<2x1xf32> to vector<2x9xf32>
      %139 = arith.mulf %138, %31 : vector<2x9xf32>
      %140 = arith.addf %136, %139 : vector<2x9xf32>
      %141 = vector.extract_strided_slice %127 {offsets = [0, 2], sizes = [2, 1], strides = [1, 1]} : vector<2x3xf32> to vector<2x1xf32>
      %142 = vector.broadcast %141 : vector<2x1xf32> to vector<2x9xf32>
      %143 = arith.mulf %142, %34 : vector<2x9xf32>
      %144 = arith.addf %140, %143 : vector<2x9xf32>
      %145 = vector.extract_strided_slice %133 {offsets = [0, 0], sizes = [2, 3], strides = [1, 1]} : vector<2x9xf32> to vector<2x3xf32>
      %146 = vector.extract_strided_slice %144 {offsets = [0, 0], sizes = [2, 3], strides = [1, 1]} : vector<2x9xf32> to vector<2x3xf32>
      %147 = arith.addf %145, %146 : vector<2x3xf32>
      %148 = arith.negf %147 : vector<2x3xf32>
      %149 = math.exp %148 : vector<2x3xf32>
      %cst_77 = arith.constant 1.000000e+00 : f32
      %150 = vector.broadcast %cst_77 : f32 to vector<2x3xf32>
      %151 = arith.addf %150, %149 : vector<2x3xf32>
      %152 = arith.divf %150, %151 : vector<2x3xf32>
      %153 = vector.extract_strided_slice %133 {offsets = [0, 3], sizes = [2, 3], strides = [1, 1]} : vector<2x9xf32> to vector<2x3xf32>
      %154 = vector.extract_strided_slice %144 {offsets = [0, 3], sizes = [2, 3], strides = [1, 1]} : vector<2x9xf32> to vector<2x3xf32>
      %155 = arith.addf %153, %154 : vector<2x3xf32>
      %156 = arith.negf %155 : vector<2x3xf32>
      %157 = math.exp %156 : vector<2x3xf32>
      %cst_78 = arith.constant 1.000000e+00 : f32
      %158 = vector.broadcast %cst_78 : f32 to vector<2x3xf32>
      %159 = arith.addf %158, %157 : vector<2x3xf32>
      %160 = arith.divf %158, %159 : vector<2x3xf32>
      %161 = vector.extract_strided_slice %133 {offsets = [0, 6], sizes = [2, 3], strides = [1, 1]} : vector<2x9xf32> to vector<2x3xf32>
      %162 = vector.extract_strided_slice %144 {offsets = [0, 6], sizes = [2, 3], strides = [1, 1]} : vector<2x9xf32> to vector<2x3xf32>
      %163 = arith.addf %162, %37 : vector<2x3xf32>
      %164 = arith.mulf %152, %163 : vector<2x3xf32>
      %165 = arith.addf %161, %164 : vector<2x3xf32>
      %166 = math.tanh %165 : vector<2x3xf32>
      %cst_79 = arith.constant 1.000000e+00 : f32
      %167 = vector.broadcast %cst_79 : f32 to vector<2x3xf32>
      %168 = arith.subf %167, %160 : vector<2x3xf32>
      %169 = arith.mulf %168, %166 : vector<2x3xf32>
      %170 = arith.mulf %160, %127 : vector<2x3xf32>
      %171 = arith.addf %169, %170 : vector<2x3xf32>
      %cst_80 = arith.constant 0.000000e+00 : f32
      %172 = vector.broadcast %cst_80 : f32 to vector<2x3xf32>
      %173 = arith.maximumf %171, %172 : vector<2x3xf32>
      %174 = vector.extract_strided_slice %173 {offsets = [0, 0], sizes = [1, 3], strides = [1, 1]} : vector<2x3xf32> to vector<1x3xf32>
      %175 = vector.extract_strided_slice %173 {offsets = [1, 0], sizes = [1, 3], strides = [1, 1]} : vector<2x3xf32> to vector<1x3xf32>
      %176 = tpu.concatenate %174, %175 in 1 : vector<1x3xf32>, vector<1x3xf32> -> vector<1x6xf32>
      %177 = vector.extract_strided_slice %88 {offsets = [4, 0], sizes = [2, 9], strides = [1, 1]} : vector<16x9xf32> to vector<2x9xf32>
      %178 = vector.extract_strided_slice %171 {offsets = [0, 0], sizes = [2, 1], strides = [1, 1]} : vector<2x3xf32> to vector<2x1xf32>
      %179 = vector.broadcast %178 : vector<2x1xf32> to vector<2x9xf32>
      %180 = arith.mulf %179, %28 : vector<2x9xf32>
      %181 = vector.extract_strided_slice %171 {offsets = [0, 1], sizes = [2, 1], strides = [1, 1]} : vector<2x3xf32> to vector<2x1xf32>
      %182 = vector.broadcast %181 : vector<2x1xf32> to vector<2x9xf32>
      %183 = arith.mulf %182, %31 : vector<2x9xf32>
      %184 = arith.addf %180, %183 : vector<2x9xf32>
      %185 = vector.extract_strided_slice %171 {offsets = [0, 2], sizes = [2, 1], strides = [1, 1]} : vector<2x3xf32> to vector<2x1xf32>
      %186 = vector.broadcast %185 : vector<2x1xf32> to vector<2x9xf32>
      %187 = arith.mulf %186, %34 : vector<2x9xf32>
      %188 = arith.addf %184, %187 : vector<2x9xf32>
      %189 = vector.extract_strided_slice %177 {offsets = [0, 0], sizes = [2, 3], strides = [1, 1]} : vector<2x9xf32> to vector<2x3xf32>
      %190 = vector.extract_strided_slice %188 {offsets = [0, 0], sizes = [2, 3], strides = [1, 1]} : vector<2x9xf32> to vector<2x3xf32>
      %191 = arith.addf %189, %190 : vector<2x3xf32>
      %192 = arith.negf %191 : vector<2x3xf32>
      %193 = math.exp %192 : vector<2x3xf32>
      %cst_81 = arith.constant 1.000000e+00 : f32
      %194 = vector.broadcast %cst_81 : f32 to vector<2x3xf32>
      %195 = arith.addf %194, %193 : vector<2x3xf32>
      %196 = arith.divf %194, %195 : vector<2x3xf32>
      %197 = vector.extract_strided_slice %177 {offsets = [0, 3], sizes = [2, 3], strides = [1, 1]} : vector<2x9xf32> to vector<2x3xf32>
      %198 = vector.extract_strided_slice %188 {offsets = [0, 3], sizes = [2, 3], strides = [1, 1]} : vector<2x9xf32> to vector<2x3xf32>
      %199 = arith.addf %197, %198 : vector<2x3xf32>
      %200 = arith.negf %199 : vector<2x3xf32>
      %201 = math.exp %200 : vector<2x3xf32>
      %cst_82 = arith.constant 1.000000e+00 : f32
      %202 = vector.broadcast %cst_82 : f32 to vector<2x3xf32>
      %203 = arith.addf %202, %201 : vector<2x3xf32>
      %204 = arith.divf %202, %203 : vector<2x3xf32>
      %205 = vector.extract_strided_slice %177 {offsets = [0, 6], sizes = [2, 3], strides = [1, 1]} : vector<2x9xf32> to vector<2x3xf32>
      %206 = vector.extract_strided_slice %188 {offsets = [0, 6], sizes = [2, 3], strides = [1, 1]} : vector<2x9xf32> to vector<2x3xf32>
      %207 = arith.addf %206, %37 : vector<2x3xf32>
      %208 = arith.mulf %196, %207 : vector<2x3xf32>
      %209 = arith.addf %205, %208 : vector<2x3xf32>
      %210 = math.tanh %209 : vector<2x3xf32>
      %cst_83 = arith.constant 1.000000e+00 : f32
      %211 = vector.broadcast %cst_83 : f32 to vector<2x3xf32>
      %212 = arith.subf %211, %204 : vector<2x3xf32>
      %213 = arith.mulf %212, %210 : vector<2x3xf32>
      %214 = arith.mulf %204, %171 : vector<2x3xf32>
      %215 = arith.addf %213, %214 : vector<2x3xf32>
      %cst_84 = arith.constant 0.000000e+00 : f32
      %216 = vector.broadcast %cst_84 : f32 to vector<2x3xf32>
      %217 = arith.maximumf %215, %216 : vector<2x3xf32>
      %218 = vector.extract_strided_slice %217 {offsets = [0, 0], sizes = [1, 3], strides = [1, 1]} : vector<2x3xf32> to vector<1x3xf32>
      %219 = vector.extract_strided_slice %217 {offsets = [1, 0], sizes = [1, 3], strides = [1, 1]} : vector<2x3xf32> to vector<1x3xf32>
      %220 = tpu.concatenate %218, %219 in 1 : vector<1x3xf32>, vector<1x3xf32> -> vector<1x6xf32>
      %221 = vector.extract_strided_slice %88 {offsets = [6, 0], sizes = [2, 9], strides = [1, 1]} : vector<16x9xf32> to vector<2x9xf32>
      %222 = vector.extract_strided_slice %215 {offsets = [0, 0], sizes = [2, 1], strides = [1, 1]} : vector<2x3xf32> to vector<2x1xf32>
      %223 = vector.broadcast %222 : vector<2x1xf32> to vector<2x9xf32>
      %224 = arith.mulf %223, %28 : vector<2x9xf32>
      %225 = vector.extract_strided_slice %215 {offsets = [0, 1], sizes = [2, 1], strides = [1, 1]} : vector<2x3xf32> to vector<2x1xf32>
      %226 = vector.broadcast %225 : vector<2x1xf32> to vector<2x9xf32>
      %227 = arith.mulf %226, %31 : vector<2x9xf32>
      %228 = arith.addf %224, %227 : vector<2x9xf32>
      %229 = vector.extract_strided_slice %215 {offsets = [0, 2], sizes = [2, 1], strides = [1, 1]} : vector<2x3xf32> to vector<2x1xf32>
      %230 = vector.broadcast %229 : vector<2x1xf32> to vector<2x9xf32>
      %231 = arith.mulf %230, %34 : vector<2x9xf32>
      %232 = arith.addf %228, %231 : vector<2x9xf32>
      %233 = vector.extract_strided_slice %221 {offsets = [0, 0], sizes = [2, 3], strides = [1, 1]} : vector<2x9xf32> to vector<2x3xf32>
      %234 = vector.extract_strided_slice %232 {offsets = [0, 0], sizes = [2, 3], strides = [1, 1]} : vector<2x9xf32> to vector<2x3xf32>
      %235 = arith.addf %233, %234 : vector<2x3xf32>
      %236 = arith.negf %235 : vector<2x3xf32>
      %237 = math.exp %236 : vector<2x3xf32>
      %cst_85 = arith.constant 1.000000e+00 : f32
      %238 = vector.broadcast %cst_85 : f32 to vector<2x3xf32>
      %239 = arith.addf %238, %237 : vector<2x3xf32>
      %240 = arith.divf %238, %239 : vector<2x3xf32>
      %241 = vector.extract_strided_slice %221 {offsets = [0, 3], sizes = [2, 3], strides = [1, 1]} : vector<2x9xf32> to vector<2x3xf32>
      %242 = vector.extract_strided_slice %232 {offsets = [0, 3], sizes = [2, 3], strides = [1, 1]} : vector<2x9xf32> to vector<2x3xf32>
      %243 = arith.addf %241, %242 : vector<2x3xf32>
      %244 = arith.negf %243 : vector<2x3xf32>
      %245 = math.exp %244 : vector<2x3xf32>
      %cst_86 = arith.constant 1.000000e+00 : f32
      %246 = vector.broadcast %cst_86 : f32 to vector<2x3xf32>
      %247 = arith.addf %246, %245 : vector<2x3xf32>
      %248 = arith.divf %246, %247 : vector<2x3xf32>
      %249 = vector.extract_strided_slice %221 {offsets = [0, 6], sizes = [2, 3], strides = [1, 1]} : vector<2x9xf32> to vector<2x3xf32>
      %250 = vector.extract_strided_slice %232 {offsets = [0, 6], sizes = [2, 3], strides = [1, 1]} : vector<2x9xf32> to vector<2x3xf32>
      %251 = arith.addf %250, %37 : vector<2x3xf32>
      %252 = arith.mulf %240, %251 : vector<2x3xf32>
      %253 = arith.addf %249, %252 : vector<2x3xf32>
      %254 = math.tanh %253 : vector<2x3xf32>
      %cst_87 = arith.constant 1.000000e+00 : f32
      %255 = vector.broadcast %cst_87 : f32 to vector<2x3xf32>
      %256 = arith.subf %255, %248 : vector<2x3xf32>
      %257 = arith.mulf %256, %254 : vector<2x3xf32>
      %258 = arith.mulf %248, %215 : vector<2x3xf32>
      %259 = arith.addf %257, %258 : vector<2x3xf32>
      %cst_88 = arith.constant 0.000000e+00 : f32
      %260 = vector.broadcast %cst_88 : f32 to vector<2x3xf32>
      %261 = arith.maximumf %259, %260 : vector<2x3xf32>
      %262 = vector.extract_strided_slice %261 {offsets = [0, 0], sizes = [1, 3], strides = [1, 1]} : vector<2x3xf32> to vector<1x3xf32>
      %263 = vector.extract_strided_slice %261 {offsets = [1, 0], sizes = [1, 3], strides = [1, 1]} : vector<2x3xf32> to vector<1x3xf32>
      %264 = tpu.concatenate %262, %263 in 1 : vector<1x3xf32>, vector<1x3xf32> -> vector<1x6xf32>
      %265 = vector.extract_strided_slice %88 {offsets = [8, 0], sizes = [2, 9], strides = [1, 1]} : vector<16x9xf32> to vector<2x9xf32>
      %266 = vector.extract_strided_slice %259 {offsets = [0, 0], sizes = [2, 1], strides = [1, 1]} : vector<2x3xf32> to vector<2x1xf32>
      %267 = vector.broadcast %266 : vector<2x1xf32> to vector<2x9xf32>
      %268 = arith.mulf %267, %28 : vector<2x9xf32>
      %269 = vector.extract_strided_slice %259 {offsets = [0, 1], sizes = [2, 1], strides = [1, 1]} : vector<2x3xf32> to vector<2x1xf32>
      %270 = vector.broadcast %269 : vector<2x1xf32> to vector<2x9xf32>
      %271 = arith.mulf %270, %31 : vector<2x9xf32>
      %272 = arith.addf %268, %271 : vector<2x9xf32>
      %273 = vector.extract_strided_slice %259 {offsets = [0, 2], sizes = [2, 1], strides = [1, 1]} : vector<2x3xf32> to vector<2x1xf32>
      %274 = vector.broadcast %273 : vector<2x1xf32> to vector<2x9xf32>
      %275 = arith.mulf %274, %34 : vector<2x9xf32>
      %276 = arith.addf %272, %275 : vector<2x9xf32>
      %277 = vector.extract_strided_slice %265 {offsets = [0, 0], sizes = [2, 3], strides = [1, 1]} : vector<2x9xf32> to vector<2x3xf32>
      %278 = vector.extract_strided_slice %276 {offsets = [0, 0], sizes = [2, 3], strides = [1, 1]} : vector<2x9xf32> to vector<2x3xf32>
      %279 = arith.addf %277, %278 : vector<2x3xf32>
      %280 = arith.negf %279 : vector<2x3xf32>
      %281 = math.exp %280 : vector<2x3xf32>
      %cst_89 = arith.constant 1.000000e+00 : f32
      %282 = vector.broadcast %cst_89 : f32 to vector<2x3xf32>
      %283 = arith.addf %282, %281 : vector<2x3xf32>
      %284 = arith.divf %282, %283 : vector<2x3xf32>
      %285 = vector.extract_strided_slice %265 {offsets = [0, 3], sizes = [2, 3], strides = [1, 1]} : vector<2x9xf32> to vector<2x3xf32>
      %286 = vector.extract_strided_slice %276 {offsets = [0, 3], sizes = [2, 3], strides = [1, 1]} : vector<2x9xf32> to vector<2x3xf32>
      %287 = arith.addf %285, %286 : vector<2x3xf32>
      %288 = arith.negf %287 : vector<2x3xf32>
      %289 = math.exp %288 : vector<2x3xf32>
      %cst_90 = arith.constant 1.000000e+00 : f32
      %290 = vector.broadcast %cst_90 : f32 to vector<2x3xf32>
      %291 = arith.addf %290, %289 : vector<2x3xf32>
      %292 = arith.divf %290, %291 : vector<2x3xf32>
      %293 = vector.extract_strided_slice %265 {offsets = [0, 6], sizes = [2, 3], strides = [1, 1]} : vector<2x9xf32> to vector<2x3xf32>
      %294 = vector.extract_strided_slice %276 {offsets = [0, 6], sizes = [2, 3], strides = [1, 1]} : vector<2x9xf32> to vector<2x3xf32>
      %295 = arith.addf %294, %37 : vector<2x3xf32>
      %296 = arith.mulf %284, %295 : vector<2x3xf32>
      %297 = arith.addf %293, %296 : vector<2x3xf32>
      %298 = math.tanh %297 : vector<2x3xf32>
      %cst_91 = arith.constant 1.000000e+00 : f32
      %299 = vector.broadcast %cst_91 : f32 to vector<2x3xf32>
      %300 = arith.subf %299, %292 : vector<2x3xf32>
      %301 = arith.mulf %300, %298 : vector<2x3xf32>
      %302 = arith.mulf %292, %259 : vector<2x3xf32>
      %303 = arith.addf %301, %302 : vector<2x3xf32>
      %cst_92 = arith.constant 0.000000e+00 : f32
      %304 = vector.broadcast %cst_92 : f32 to vector<2x3xf32>
      %305 = arith.maximumf %303, %304 : vector<2x3xf32>
      %306 = vector.extract_strided_slice %305 {offsets = [0, 0], sizes = [1, 3], strides = [1, 1]} : vector<2x3xf32> to vector<1x3xf32>
      %307 = vector.extract_strided_slice %305 {offsets = [1, 0], sizes = [1, 3], strides = [1, 1]} : vector<2x3xf32> to vector<1x3xf32>
      %308 = tpu.concatenate %306, %307 in 1 : vector<1x3xf32>, vector<1x3xf32> -> vector<1x6xf32>
      %309 = vector.extract_strided_slice %88 {offsets = [10, 0], sizes = [2, 9], strides = [1, 1]} : vector<16x9xf32> to vector<2x9xf32>
      %310 = vector.extract_strided_slice %303 {offsets = [0, 0], sizes = [2, 1], strides = [1, 1]} : vector<2x3xf32> to vector<2x1xf32>
      %311 = vector.broadcast %310 : vector<2x1xf32> to vector<2x9xf32>
      %312 = arith.mulf %311, %28 : vector<2x9xf32>
      %313 = vector.extract_strided_slice %303 {offsets = [0, 1], sizes = [2, 1], strides = [1, 1]} : vector<2x3xf32> to vector<2x1xf32>
      %314 = vector.broadcast %313 : vector<2x1xf32> to vector<2x9xf32>
      %315 = arith.mulf %314, %31 : vector<2x9xf32>
      %316 = arith.addf %312, %315 : vector<2x9xf32>
      %317 = vector.extract_strided_slice %303 {offsets = [0, 2], sizes = [2, 1], strides = [1, 1]} : vector<2x3xf32> to vector<2x1xf32>
      %318 = vector.broadcast %317 : vector<2x1xf32> to vector<2x9xf32>
      %319 = arith.mulf %318, %34 : vector<2x9xf32>
      %320 = arith.addf %316, %319 : vector<2x9xf32>
      %321 = vector.extract_strided_slice %309 {offsets = [0, 0], sizes = [2, 3], strides = [1, 1]} : vector<2x9xf32> to vector<2x3xf32>
      %322 = vector.extract_strided_slice %320 {offsets = [0, 0], sizes = [2, 3], strides = [1, 1]} : vector<2x9xf32> to vector<2x3xf32>
      %323 = arith.addf %321, %322 : vector<2x3xf32>
      %324 = arith.negf %323 : vector<2x3xf32>
      %325 = math.exp %324 : vector<2x3xf32>
      %cst_93 = arith.constant 1.000000e+00 : f32
      %326 = vector.broadcast %cst_93 : f32 to vector<2x3xf32>
      %327 = arith.addf %326, %325 : vector<2x3xf32>
      %328 = arith.divf %326, %327 : vector<2x3xf32>
      %329 = vector.extract_strided_slice %309 {offsets = [0, 3], sizes = [2, 3], strides = [1, 1]} : vector<2x9xf32> to vector<2x3xf32>
      %330 = vector.extract_strided_slice %320 {offsets = [0, 3], sizes = [2, 3], strides = [1, 1]} : vector<2x9xf32> to vector<2x3xf32>
      %331 = arith.addf %329, %330 : vector<2x3xf32>
      %332 = arith.negf %331 : vector<2x3xf32>
      %333 = math.exp %332 : vector<2x3xf32>
      %cst_94 = arith.constant 1.000000e+00 : f32
      %334 = vector.broadcast %cst_94 : f32 to vector<2x3xf32>
      %335 = arith.addf %334, %333 : vector<2x3xf32>
      %336 = arith.divf %334, %335 : vector<2x3xf32>
      %337 = vector.extract_strided_slice %309 {offsets = [0, 6], sizes = [2, 3], strides = [1, 1]} : vector<2x9xf32> to vector<2x3xf32>
      %338 = vector.extract_strided_slice %320 {offsets = [0, 6], sizes = [2, 3], strides = [1, 1]} : vector<2x9xf32> to vector<2x3xf32>
      %339 = arith.addf %338, %37 : vector<2x3xf32>
      %340 = arith.mulf %328, %339 : vector<2x3xf32>
      %341 = arith.addf %337, %340 : vector<2x3xf32>
      %342 = math.tanh %341 : vector<2x3xf32>
      %cst_95 = arith.constant 1.000000e+00 : f32
      %343 = vector.broadcast %cst_95 : f32 to vector<2x3xf32>
      %344 = arith.subf %343, %336 : vector<2x3xf32>
      %345 = arith.mulf %344, %342 : vector<2x3xf32>
      %346 = arith.mulf %336, %303 : vector<2x3xf32>
      %347 = arith.addf %345, %346 : vector<2x3xf32>
      %cst_96 = arith.constant 0.000000e+00 : f32
      %348 = vector.broadcast %cst_96 : f32 to vector<2x3xf32>
      %349 = arith.maximumf %347, %348 : vector<2x3xf32>
      %350 = vector.extract_strided_slice %349 {offsets = [0, 0], sizes = [1, 3], strides = [1, 1]} : vector<2x3xf32> to vector<1x3xf32>
      %351 = vector.extract_strided_slice %349 {offsets = [1, 0], sizes = [1, 3], strides = [1, 1]} : vector<2x3xf32> to vector<1x3xf32>
      %352 = tpu.concatenate %350, %351 in 1 : vector<1x3xf32>, vector<1x3xf32> -> vector<1x6xf32>
      %353 = vector.extract_strided_slice %88 {offsets = [12, 0], sizes = [2, 9], strides = [1, 1]} : vector<16x9xf32> to vector<2x9xf32>
      %354 = vector.extract_strided_slice %347 {offsets = [0, 0], sizes = [2, 1], strides = [1, 1]} : vector<2x3xf32> to vector<2x1xf32>
      %355 = vector.broadcast %354 : vector<2x1xf32> to vector<2x9xf32>
      %356 = arith.mulf %355, %28 : vector<2x9xf32>
      %357 = vector.extract_strided_slice %347 {offsets = [0, 1], sizes = [2, 1], strides = [1, 1]} : vector<2x3xf32> to vector<2x1xf32>
      %358 = vector.broadcast %357 : vector<2x1xf32> to vector<2x9xf32>
      %359 = arith.mulf %358, %31 : vector<2x9xf32>
      %360 = arith.addf %356, %359 : vector<2x9xf32>
      %361 = vector.extract_strided_slice %347 {offsets = [0, 2], sizes = [2, 1], strides = [1, 1]} : vector<2x3xf32> to vector<2x1xf32>
      %362 = vector.broadcast %361 : vector<2x1xf32> to vector<2x9xf32>
      %363 = arith.mulf %362, %34 : vector<2x9xf32>
      %364 = arith.addf %360, %363 : vector<2x9xf32>
      %365 = vector.extract_strided_slice %353 {offsets = [0, 0], sizes = [2, 3], strides = [1, 1]} : vector<2x9xf32> to vector<2x3xf32>
      %366 = vector.extract_strided_slice %364 {offsets = [0, 0], sizes = [2, 3], strides = [1, 1]} : vector<2x9xf32> to vector<2x3xf32>
      %367 = arith.addf %365, %366 : vector<2x3xf32>
      %368 = arith.negf %367 : vector<2x3xf32>
      %369 = math.exp %368 : vector<2x3xf32>
      %cst_97 = arith.constant 1.000000e+00 : f32
      %370 = vector.broadcast %cst_97 : f32 to vector<2x3xf32>
      %371 = arith.addf %370, %369 : vector<2x3xf32>
      %372 = arith.divf %370, %371 : vector<2x3xf32>
      %373 = vector.extract_strided_slice %353 {offsets = [0, 3], sizes = [2, 3], strides = [1, 1]} : vector<2x9xf32> to vector<2x3xf32>
      %374 = vector.extract_strided_slice %364 {offsets = [0, 3], sizes = [2, 3], strides = [1, 1]} : vector<2x9xf32> to vector<2x3xf32>
      %375 = arith.addf %373, %374 : vector<2x3xf32>
      %376 = arith.negf %375 : vector<2x3xf32>
      %377 = math.exp %376 : vector<2x3xf32>
      %cst_98 = arith.constant 1.000000e+00 : f32
      %378 = vector.broadcast %cst_98 : f32 to vector<2x3xf32>
      %379 = arith.addf %378, %377 : vector<2x3xf32>
      %380 = arith.divf %378, %379 : vector<2x3xf32>
      %381 = vector.extract_strided_slice %353 {offsets = [0, 6], sizes = [2, 3], strides = [1, 1]} : vector<2x9xf32> to vector<2x3xf32>
      %382 = vector.extract_strided_slice %364 {offsets = [0, 6], sizes = [2, 3], strides = [1, 1]} : vector<2x9xf32> to vector<2x3xf32>
      %383 = arith.addf %382, %37 : vector<2x3xf32>
      %384 = arith.mulf %372, %383 : vector<2x3xf32>
      %385 = arith.addf %381, %384 : vector<2x3xf32>
      %386 = math.tanh %385 : vector<2x3xf32>
      %cst_99 = arith.constant 1.000000e+00 : f32
      %387 = vector.broadcast %cst_99 : f32 to vector<2x3xf32>
      %388 = arith.subf %387, %380 : vector<2x3xf32>
      %389 = arith.mulf %388, %386 : vector<2x3xf32>
      %390 = arith.mulf %380, %347 : vector<2x3xf32>
      %391 = arith.addf %389, %390 : vector<2x3xf32>
      %cst_100 = arith.constant 0.000000e+00 : f32
      %392 = vector.broadcast %cst_100 : f32 to vector<2x3xf32>
      %393 = arith.maximumf %391, %392 : vector<2x3xf32>
      %394 = vector.extract_strided_slice %393 {offsets = [0, 0], sizes = [1, 3], strides = [1, 1]} : vector<2x3xf32> to vector<1x3xf32>
      %395 = vector.extract_strided_slice %393 {offsets = [1, 0], sizes = [1, 3], strides = [1, 1]} : vector<2x3xf32> to vector<1x3xf32>
      %396 = tpu.concatenate %394, %395 in 1 : vector<1x3xf32>, vector<1x3xf32> -> vector<1x6xf32>
      %397 = vector.extract_strided_slice %88 {offsets = [14, 0], sizes = [2, 9], strides = [1, 1]} : vector<16x9xf32> to vector<2x9xf32>
      %398 = vector.extract_strided_slice %391 {offsets = [0, 0], sizes = [2, 1], strides = [1, 1]} : vector<2x3xf32> to vector<2x1xf32>
      %399 = vector.broadcast %398 : vector<2x1xf32> to vector<2x9xf32>
      %400 = arith.mulf %399, %28 : vector<2x9xf32>
      %401 = vector.extract_strided_slice %391 {offsets = [0, 1], sizes = [2, 1], strides = [1, 1]} : vector<2x3xf32> to vector<2x1xf32>
      %402 = vector.broadcast %401 : vector<2x1xf32> to vector<2x9xf32>
      %403 = arith.mulf %402, %31 : vector<2x9xf32>
      %404 = arith.addf %400, %403 : vector<2x9xf32>
      %405 = vector.extract_strided_slice %391 {offsets = [0, 2], sizes = [2, 1], strides = [1, 1]} : vector<2x3xf32> to vector<2x1xf32>
      %406 = vector.broadcast %405 : vector<2x1xf32> to vector<2x9xf32>
      %407 = arith.mulf %406, %34 : vector<2x9xf32>
      %408 = arith.addf %404, %407 : vector<2x9xf32>
      %409 = vector.extract_strided_slice %397 {offsets = [0, 0], sizes = [2, 3], strides = [1, 1]} : vector<2x9xf32> to vector<2x3xf32>
      %410 = vector.extract_strided_slice %408 {offsets = [0, 0], sizes = [2, 3], strides = [1, 1]} : vector<2x9xf32> to vector<2x3xf32>
      %411 = arith.addf %409, %410 : vector<2x3xf32>
      %412 = arith.negf %411 : vector<2x3xf32>
      %413 = math.exp %412 : vector<2x3xf32>
      %cst_101 = arith.constant 1.000000e+00 : f32
      %414 = vector.broadcast %cst_101 : f32 to vector<2x3xf32>
      %415 = arith.addf %414, %413 : vector<2x3xf32>
      %416 = arith.divf %414, %415 : vector<2x3xf32>
      %417 = vector.extract_strided_slice %397 {offsets = [0, 3], sizes = [2, 3], strides = [1, 1]} : vector<2x9xf32> to vector<2x3xf32>
      %418 = vector.extract_strided_slice %408 {offsets = [0, 3], sizes = [2, 3], strides = [1, 1]} : vector<2x9xf32> to vector<2x3xf32>
      %419 = arith.addf %417, %418 : vector<2x3xf32>
      %420 = arith.negf %419 : vector<2x3xf32>
      %421 = math.exp %420 : vector<2x3xf32>
      %cst_102 = arith.constant 1.000000e+00 : f32
      %422 = vector.broadcast %cst_102 : f32 to vector<2x3xf32>
      %423 = arith.addf %422, %421 : vector<2x3xf32>
      %424 = arith.divf %422, %423 : vector<2x3xf32>
      %425 = vector.extract_strided_slice %397 {offsets = [0, 6], sizes = [2, 3], strides = [1, 1]} : vector<2x9xf32> to vector<2x3xf32>
      %426 = vector.extract_strided_slice %408 {offsets = [0, 6], sizes = [2, 3], strides = [1, 1]} : vector<2x9xf32> to vector<2x3xf32>
      %427 = arith.addf %426, %37 : vector<2x3xf32>
      %428 = arith.mulf %416, %427 : vector<2x3xf32>
      %429 = arith.addf %425, %428 : vector<2x3xf32>
      %430 = math.tanh %429 : vector<2x3xf32>
      %cst_103 = arith.constant 1.000000e+00 : f32
      %431 = vector.broadcast %cst_103 : f32 to vector<2x3xf32>
      %432 = arith.subf %431, %424 : vector<2x3xf32>
      %433 = arith.mulf %432, %430 : vector<2x3xf32>
      %434 = arith.mulf %424, %391 : vector<2x3xf32>
      %435 = arith.addf %433, %434 : vector<2x3xf32>
      %cst_104 = arith.constant 0.000000e+00 : f32
      %436 = vector.broadcast %cst_104 : f32 to vector<2x3xf32>
      %437 = arith.maximumf %435, %436 : vector<2x3xf32>
      %438 = vector.extract_strided_slice %437 {offsets = [0, 0], sizes = [1, 3], strides = [1, 1]} : vector<2x3xf32> to vector<1x3xf32>
      %439 = vector.extract_strided_slice %437 {offsets = [1, 0], sizes = [1, 3], strides = [1, 1]} : vector<2x3xf32> to vector<1x3xf32>
      %440 = tpu.concatenate %438, %439 in 1 : vector<1x3xf32>, vector<1x3xf32> -> vector<1x6xf32>
      %441 = tpu.concatenate %132, %176, %220, %264, %308, %352, %396, %440 in 0 : vector<1x6xf32>, vector<1x6xf32>, vector<1x6xf32>, vector<1x6xf32>, vector<1x6xf32>, vector<1x6xf32>, vector<1x6xf32>, vector<1x6xf32> -> vector<8x6xf32>
      %c8_i32_105 = arith.constant 8 : i32
      %442 = arith.muli %arg13, %c8_i32_105 : i32
      %443 = tpu.assume_multiple %442, 8 : i32
      %444 = arith.index_cast %443 : i32 to index
      %c0_106 = arith.constant 0 : index
      %445 = vector.load %arg11[%444, %c0_106] : memref<64x6xf32, #tpu.memory_space<vmem>>, vector<8x6xf32>
      tpu.vector_store %arg11[%444, %c0_106], %441 {strides = array<i32>} : memref<64x6xf32, #tpu.memory_space<vmem>>, vector<8x6xf32>,
      scf.yield %435 : vector<2x3xf32>
    }
    %c8_i32_24 = arith.constant 8 : i32
    %c0_25 = arith.constant 0 : index
    %c0_26 = arith.constant 0 : index
    %41 = vector.load %arg11[%c0_25, %c0_26] : memref<64x6xf32, #tpu.memory_space<vmem>>, vector<64x3xf32>
    %c16_27 = arith.constant 16 : index
    %c17 = arith.constant 17 : index
    %42 = vector.load %arg12[%c16_27, %c17] : memref<176x20xf32, #tpu.memory_space<vmem>>, vector<64x3xf32>
    tpu.vector_store %arg12[%c16_27, %c17], %41 {strides = array<i32>} : memref<176x20xf32, #tpu.memory_space<vmem>>, vector<64x3xf32>,
    %c0_28 = arith.constant 0 : index
    %c3 = arith.constant 3 : index
    %43 = vector.load %arg11[%c0_28, %c3] : memref<64x6xf32, #tpu.memory_space<vmem>>, vector<64x3xf32>
    %c96_29 = arith.constant 96 : index
    %c17_30 = arith.constant 17 : index
    %44 = vector.load %arg12[%c96_29, %c17_30] : memref<176x20xf32, #tpu.memory_space<vmem>>, vector<64x3xf32>
    tpu.vector_store %arg12[%c96_29, %c17_30], %43 {strides = array<i32>} : memref<176x20xf32, #tpu.memory_space<vmem>>, vector<64x3xf32>,
    %c6_31 = arith.constant 6 : index
    %c0_32 = arith.constant 0 : index
    %45 = vector.load %arg12[%c6_31, %c0_32] : memref<176x20xf32, #tpu.memory_space<vmem>>, vector<160x20xf32>
    %c0_33 = arith.constant 0 : index
    %c0_34 = arith.constant 0 : index
    %c0_35 = arith.constant 0 : index
    %46 = vector.load %arg7[%c0_33, %c0_34, %c0_35] : memref<3x20x24xf32, #tpu.memory_space<vmem>>, vector<1x20x24xf32>
    %47 = vector.shape_cast %46 : vector<1x20x24xf32> to vector<20x24xf32>
    %cst_36 = arith.constant dense<0.000000e+00> : vector<160x24xf32>
    %48 = tpu.matmul %45, %47, %cst_36 {dimension_numbers = #tpu.dot_dimension_numbers<[1], [0], [0], [1], [0, 0, 1, 1], [], []>} : vector<160x20xf32>, vector<20x24xf32>, vector<160x24xf32> -> vector<160x24xf32>
    %c8_37 = arith.constant 8 : index
    %c0_38 = arith.constant 0 : index
    %49 = vector.load %arg12[%c8_37, %c0_38] : memref<176x20xf32, #tpu.memory_space<vmem>>, vector<160x20xf32>
    %c1_39 = arith.constant 1 : index
    %c0_40 = arith.constant 0 : index
    %c0_41 = arith.constant 0 : index
    %50 = vector.load %arg7[%c1_39, %c0_40, %c0_41] : memref<3x20x24xf32, #tpu.memory_space<vmem>>, vector<1x20x24xf32>
    %51 = vector.shape_cast %50 : vector<1x20x24xf32> to vector<20x24xf32>
    %cst_42 = arith.constant dense<0.000000e+00> : vector<160x24xf32>
    %52 = tpu.matmul %49, %51, %cst_42 {dimension_numbers = #tpu.dot_dimension_numbers<[1], [0], [0], [1], [0, 0, 1, 1], [], []>} : vector<160x20xf32>, vector<20x24xf32>, vector<160x24xf32> -> vector<160x24xf32>
    %53 = arith.addf %48, %52 : vector<160x24xf32>
    %c10_43 = arith.constant 10 : index
    %c0_44 = arith.constant 0 : index
    %54 = vector.load %arg12[%c10_43, %c0_44] : memref<176x20xf32, #tpu.memory_space<vmem>>, vector<160x20xf32>
    %c2_45 = arith.constant 2 : index
    %c0_46 = arith.constant 0 : index
    %c0_47 = arith.constant 0 : index
    %55 = vector.load %arg7[%c2_45, %c0_46, %c0_47] : memref<3x20x24xf32, #tpu.memory_space<vmem>>, vector<1x20x24xf32>
    %56 = vector.shape_cast %55 : vector<1x20x24xf32> to vector<20x24xf32>
    %cst_48 = arith.constant dense<0.000000e+00> : vector<160x24xf32>
    %57 = tpu.matmul %54, %56, %cst_48 {dimension_numbers = #tpu.dot_dimension_numbers<[1], [0], [0], [1], [0, 0, 1, 1], [], []>} : vector<160x20xf32>, vector<20x24xf32>, vector<160x24xf32> -> vector<160x24xf32>
    %58 = arith.addf %53, %57 : vector<160x24xf32>
    %c7 = arith.constant 7 : index
    %c0_49 = arith.constant 0 : index
    %59 = vector.load %arg0[%c7, %c0_49] : memref<176x16xf32, #tpu.memory_space<vmem>>, vector<160x16xf32>
    %c0_50 = arith.constant 0 : index
    %c0_51 = arith.constant 0 : index
    %c0_52 = arith.constant 0 : index
    %60 = vector.load %arg9[%c0_50, %c0_51, %c0_52] : memref<3x16x24xf32, #tpu.memory_space<vmem>>, vector<1x16x24xf32>
    %61 = vector.shape_cast %60 : vector<1x16x24xf32> to vector<16x24xf32>
    %cst_53 = arith.constant dense<0.000000e+00> : vector<160x24xf32>
    %62 = tpu.matmul %59, %61, %cst_53 {dimension_numbers = #tpu.dot_dimension_numbers<[1], [0], [0], [1], [0, 0, 1, 1], [], []>} : vector<160x16xf32>, vector<16x24xf32>, vector<160x24xf32> -> vector<160x24xf32>
    %63 = arith.addf %58, %62 : vector<160x24xf32>
    %c8_54 = arith.constant 8 : index
    %c0_55 = arith.constant 0 : index
    %64 = vector.load %arg0[%c8_54, %c0_55] : memref<176x16xf32, #tpu.memory_space<vmem>>, vector<160x16xf32>
    %c1_56 = arith.constant 1 : index
    %c0_57 = arith.constant 0 : index
    %c0_58 = arith.constant 0 : index
    %65 = vector.load %arg9[%c1_56, %c0_57, %c0_58] : memref<3x16x24xf32, #tpu.memory_space<vmem>>, vector<1x16x24xf32>
    %66 = vector.shape_cast %65 : vector<1x16x24xf32> to vector<16x24xf32>
    %cst_59 = arith.constant dense<0.000000e+00> : vector<160x24xf32>
    %67 = tpu.matmul %64, %66, %cst_59 {dimension_numbers = #tpu.dot_dimension_numbers<[1], [0], [0], [1], [0, 0, 1, 1], [], []>} : vector<160x16xf32>, vector<16x24xf32>, vector<160x24xf32> -> vector<160x24xf32>
    %68 = arith.addf %63, %67 : vector<160x24xf32>
    %c9 = arith.constant 9 : index
    %c0_60 = arith.constant 0 : index
    %69 = vector.load %arg0[%c9, %c0_60] : memref<176x16xf32, #tpu.memory_space<vmem>>, vector<160x16xf32>
    %c2_61 = arith.constant 2 : index
    %c0_62 = arith.constant 0 : index
    %c0_63 = arith.constant 0 : index
    %70 = vector.load %arg9[%c2_61, %c0_62, %c0_63] : memref<3x16x24xf32, #tpu.memory_space<vmem>>, vector<1x16x24xf32>
    %71 = vector.shape_cast %70 : vector<1x16x24xf32> to vector<16x24xf32>
    %cst_64 = arith.constant dense<0.000000e+00> : vector<160x24xf32>
    %72 = tpu.matmul %69, %71, %cst_64 {dimension_numbers = #tpu.dot_dimension_numbers<[1], [0], [0], [1], [0, 0, 1, 1], [], []>} : vector<160x16xf32>, vector<16x24xf32>, vector<160x24xf32> -> vector<160x24xf32>
    %73 = arith.addf %68, %72 : vector<160x24xf32>
    %c0_65 = arith.constant 0 : index
    %c0_66 = arith.constant 0 : index
    %74 = vector.load %arg8[%c0_65, %c0_66] : memref<1x24xf32, #tpu.memory_space<vmem>>, vector<1x24xf32>
    %75 = vector.broadcast %74 : vector<1x24xf32> to vector<160x24xf32>
    %76 = arith.addf %73, %75 : vector<160x24xf32>
    %77 = vector.extract_strided_slice %76 {offsets = [8, 0], sizes = [64, 24], strides = [1, 1]} : vector<160x24xf32> to vector<64x24xf32>
    %cst_67 = arith.constant 0.000000e+00 : f32
    %78 = vector.broadcast %cst_67 : f32 to vector<64x24xf32>
    %79 = arith.maximumf %77, %78 : vector<64x24xf32>
    %c0_68 = arith.constant 0 : index
    %c0_69 = arith.constant 0 : index
    %80 = vector.load %arg10[%c0_68, %c0_69] : memref<128x24xf32, #tpu.memory_space<vmem>>, vector<64x24xf32>
    tpu.vector_store %arg10[%c0_68, %c0_69], %79 {strides = array<i32>} : memref<128x24xf32, #tpu.memory_space<vmem>>, vector<64x24xf32>,
    %81 = vector.extract_strided_slice %76 {offsets = [88, 0], sizes = [64, 24], strides = [1, 1]} : vector<160x24xf32> to vector<64x24xf32>
    %cst_70 = arith.constant 0.000000e+00 : f32
    %82 = vector.broadcast %cst_70 : f32 to vector<64x24xf32>
    %83 = arith.maximumf %81, %82 : vector<64x24xf32>
    %c64 = arith.constant 64 : index
    %c0_71 = arith.constant 0 : index
    %84 = vector.load %arg10[%c64, %c0_71] : memref<128x24xf32, #tpu.memory_space<vmem>>, vector<64x24xf32>
    tpu.vector_store %arg10[%c64, %c0_71], %83 {strides = array<i32>} : memref<128x24xf32, #tpu.memory_space<vmem>>, vector<64x24xf32>,
    return
  }
}

</mosaic_0001>

<llo_original>
// kernel: cnn_block_forward.1
$region0: #{cnn_block_forward.1}
  #allocation0 [shape = 'u32[]', space=smem, size = 0x4, offset = 0x4, fixed_abs, tag = 'smem constant byte address 0x4 - core index']
  #allocation1 [shape = 'u32[72,128]{1,0:T(1,128)}', space=vmem, size = 0x9000, scoped, tag = 'internal scratch']
  #allocation2 [shape = 'f32[64,6]{1,0:T(8,128)}', space=vmem, size = 0x8000, scoped, tag = 'scratch operand']
  #allocation3 [shape = 'f32[176,20]{1,0:T(8,128)}', space=vmem, size = 0x16000, scoped, tag = 'scratch operand']
  %s0 = inlined_call_operand.vmem [shape: f32[176,16], index: 0, kind: input, shape index: {}]
  %s1 = inlined_call_operand.vmem [shape: f32[176,9], index: 1, kind: input, shape index: {}]
  %s2 = inlined_call_operand.vmem [shape: f32[128,9], index: 2, kind: input, shape index: {}]
  %s3 = inlined_call_operand.vmem [shape: f32[3,9], index: 3, kind: input, shape index: {}]
  %s4 = inlined_call_operand.vmem [shape: f32[1,3], index: 4, kind: input, shape index: {}]
  %s5 = inlined_call_operand.vmem [shape: f32[3,9,17], index: 5, kind: input, shape index: {}]
  %s6 = inlined_call_operand.vmem [shape: f32[1,17], index: 6, kind: input, shape index: {}]
  %s7 = inlined_call_operand.vmem [shape: f32[3,20,24], index: 7, kind: input, shape index: {}]
  %s8 = inlined_call_operand.vmem [shape: f32[1,24], index: 8, kind: input, shape index: {}]
  %s9 = inlined_call_operand.vmem [shape: f32[3,16,24], index: 9, kind: input, shape index: {}]
  %s10 = inlined_call_operand.vmem [shape: f32[128,24], index: 10, kind: output, shape index: {}]
  %s11 = sld [smem:[#allocation0]]
  $region57: #{cnn_block_forward.1} parent=0
    _
  %s13 = ssub.s32 1, %s11
  %s14 = scalar_select 0, %s13, %s11
  // Predicated region
  $region2: #{cnn_block_forward.1} parent=0 // pred_check
    _
  $region3: #{cnn_block_forward.1} parent=0 // pred_check_branch
    %16 = sbr.rel (0) target = $region5
  $region4: #{cnn_block_forward.1} parent=0 // pred_region
    _
  $region5: #{cnn_block_forward.1} parent=0 // pred_fallthru
    _
  // Predicated region
  $region6: #{cnn_block_forward.1} parent=0 // pred_check
    _
  $region7: #{cnn_block_forward.1} parent=0 // pred_check_branch
    %18 = sbr.rel (0) target = $region9
  $region8: #{cnn_block_forward.1} parent=0 // pred_region
    _
  $region9: #{cnn_block_forward.1} parent=0 // pred_fallthru
    _
  // Predicated region
  $region10: #{cnn_block_forward.1} parent=0 // pred_check
    _
  $region11: #{cnn_block_forward.1} parent=0 // pred_check_branch
    %20 = sbr.rel (0) target = $region13
  $region12: #{cnn_block_forward.1} parent=0 // pred_region
    _
  $region13: #{cnn_block_forward.1} parent=0 // pred_fallthru
    _
  // Predicated region
  $region14: #{cnn_block_forward.1} parent=0 // pred_check
    _
  $region15: #{cnn_block_forward.1} parent=0 // pred_check_branch
    %22 = sbr.rel (0) target = $region17
  $region16: #{cnn_block_forward.1} parent=0 // pred_region
    _
  $region17: #{cnn_block_forward.1} parent=0 // pred_fallthru
    _
  // Predicated region
  $region18: #{cnn_block_forward.1} parent=0 // pred_check
    _
  $region19: #{cnn_block_forward.1} parent=0 // pred_check_branch
    %24 = sbr.rel (0) target = $region21
  $region20: #{cnn_block_forward.1} parent=0 // pred_region
    _
  $region21: #{cnn_block_forward.1} parent=0 // pred_fallthru
    _
  // Predicated region
  $region22: #{cnn_block_forward.1} parent=0 // pred_check
    _
  $region23: #{cnn_block_forward.1} parent=0 // pred_check_branch
    %26 = sbr.rel (0) target = $region25
  $region24: #{cnn_block_forward.1} parent=0 // pred_region
    _
  $region25: #{cnn_block_forward.1} parent=0 // pred_fallthru
    _
  // Predicated region
  $region26: #{cnn_block_forward.1} parent=0 // pred_check
    _
  $region27: #{cnn_block_forward.1} parent=0 // pred_check_branch
    %28 = sbr.rel (0) target = $region29
  $region28: #{cnn_block_forward.1} parent=0 // pred_region
    _
  $region29: #{cnn_block_forward.1} parent=0 // pred_fallthru
    _
  // Predicated region
  $region30: #{cnn_block_forward.1} parent=0 // pred_check
    _
  $region31: #{cnn_block_forward.1} parent=0 // pred_check_branch
    %30 = sbr.rel (0) target = $region33
  $region32: #{cnn_block_forward.1} parent=0 // pred_region
    _
  $region33: #{cnn_block_forward.1} parent=0 // pred_fallthru
    _
  // Predicated region
  $region34: #{cnn_block_forward.1} parent=0 // pred_check
    _
  $region35: #{cnn_block_forward.1} parent=0 // pred_check_branch
    %32 = sbr.rel (0) target = $region37
  $region36: #{cnn_block_forward.1} parent=0 // pred_region
    _
  $region37: #{cnn_block_forward.1} parent=0 // pred_fallthru
    _
  // Predicated region
  $region38: #{cnn_block_forward.1} parent=0 // pred_check
    _
  $region39: #{cnn_block_forward.1} parent=0 // pred_check_branch
    %34 = sbr.rel (0) target = $region41
  $region40: #{cnn_block_forward.1} parent=0 // pred_region
    _
  $region41: #{cnn_block_forward.1} parent=0 // pred_fallthru
    _
  %v35 = vld [vmem:[%s1 + $0x6] sm:$0xff]
  %v36 = vld [vmem:[%s1 + $0xe] sm:$0xff]
  %v37 = vld [vmem:[%s1 + $0x16] sm:$0xff]
  %v38 = vld [vmem:[%s1 + $0x1e] sm:$0xff]
  %v39 = vld [vmem:[%s1 + $0x26] sm:$0xff]
  %v40 = vld [vmem:[%s1 + $0x2e] sm:$0xff]
  %v41 = vld [vmem:[%s1 + $0x36] sm:$0xff]
  %v42 = vld [vmem:[%s1 + $0x3e] sm:$0xff]
  %v43 = vld [vmem:[%s1 + $0x46] sm:$0xff]
  %v44 = vld [vmem:[%s1 + $0x4e] sm:$0xff]
  %v45 = vld [vmem:[%s1 + $0x56] sm:$0xff]
  %v46 = vld [vmem:[%s1 + $0x5e] sm:$0xff]
  %v47 = vld [vmem:[%s1 + $0x66] sm:$0xff]
  %v48 = vld [vmem:[%s1 + $0x6e] sm:$0xff]
  %v49 = vld [vmem:[%s1 + $0x76] sm:$0xff]
  %v50 = vld [vmem:[%s1 + $0x7e] sm:$0xff]
  %v51 = vld [vmem:[%s1 + $0x86] sm:$0xff]
  %v52 = vld [vmem:[%s1 + $0x8e] sm:$0xff]
  %v53 = vld [vmem:[%s1 + $0x96] sm:$0xff]
  %v54 = vld [vmem:[%s1 + $0x9e] sm:$0xff]
  %v55 = vld [vmem:[%s5] sm:$0xff]
  %v56 = vld [vmem:[%s5 + $0x8] sm:$0x1]
  %v57 = vld [vmem:[%s1 + $0x8] sm:$0xff]
  %v58 = vld [vmem:[%s1 + $0x10] sm:$0xff]
  %v59 = vld [vmem:[%s1 + $0x18] sm:$0xff]
  %v60 = vld [vmem:[%s1 + $0x20] sm:$0xff]
  %v61 = vld [vmem:[%s1 + $0x28] sm:$0xff]
  %v62 = vld [vmem:[%s1 + $0x30] sm:$0xff]
  %v63 = vld [vmem:[%s1 + $0x38] sm:$0xff]
  %v64 = vld [vmem:[%s1 + $0x40] sm:$0xff]
  %v65 = vld [vmem:[%s1 + $0x48] sm:$0xff]
  %v66 = vld [vmem:[%s1 + $0x50] sm:$0xff]
  %v67 = vld [vmem:[%s1 + $0x58] sm:$0xff]
  %v68 = vld [vmem:[%s1 + $0x60] sm:$0xff]
  %v69 = vld [vmem:[%s1 + $0x68] sm:$0xff]
  %v70 = vld [vmem:[%s1 + $0x70] sm:$0xff]
  %v71 = vld [vmem:[%s1 + $0x78] sm:$0xff]
  %v72 = vld [vmem:[%s1 + $0x80] sm:$0xff]
  %v73 = vld [vmem:[%s1 + $0x88] sm:$0xff]
  %v74 = vld [vmem:[%s1 + $0x90] sm:$0xff]
  %v75 = vld [vmem:[%s1 + $0x98] sm:$0xff]
  %v76 = vld [vmem:[%s1 + $0xa0] sm:$0xff]
  %s77 = scalar_lea.vmem %s5, 16
  %v78 = vld [vmem:[%s77] sm:$0xff]
  %v79 = vld [vmem:[%s77 + $0x8] sm:$0x1]
  %vm80 = vcmask 72704
  %v82 = vsel %vm80, %v57, 0
  %v85 = vsel %vm80, %v58, 0
  %v88 = vsel %vm80, %v59, 0
  %v91 = vsel %vm80, %v60, 0
  %v94 = vsel %vm80, %v61, 0
  %v97 = vsel %vm80, %v62, 0
  %v100 = vsel %vm80, %v63, 0
  %v103 = vsel %vm80, %v64, 0
  %v106 = vsel %vm80, %v65, 0
  %v109 = vsel %vm80, %v66, 0
  %v112 = vsel %vm80, %v67, 0
  %v115 = vsel %vm80, %v68, 0
  %v118 = vsel %vm80, %v69, 0
  %v121 = vsel %vm80, %v70, 0
  %v124 = vsel %vm80, %v71, 0
  %v127 = vsel %vm80, %v72, 0
  %v130 = vsel %vm80, %v73, 0
  %v133 = vsel %vm80, %v74, 0
  %v136 = vsel %vm80, %v75, 0
  %v139 = vsel %vm80, %v76, 0
  %vm141 = vcmask 1040384
  %v143 = vsel %vm141, %v79, 0
  %145 = vmatpush.msra.mxu0 0.0
  %146 = vmatpush.msra.mxu0 0.0
  %147 = vmatpush.msra.mxu0 0.0
  %148 = vmatpush.msra.mxu0 0.0
  %149 = vmatpush.msra.mxu0 0.0
  %150 = vmatpush.msra.mxu0 0.0
  %151 = vmatpush.msra.mxu0 0.0
  %152 = vmatpush.msra.mxu0 0.0
  %153 = vmatpush.msra.mxu0 0.0
  %154 = vmatpush.msra.mxu0 0.0
  %155 = vmatpush.msra.mxu0 0.0
  %156 = vmatpush.msra.mxu0 0.0
  %157 = vmatpush.msra.mxu0 0.0
  %158 = vmatpush.msra.mxu0 0.0
  %159 = vmatpush.msra.mxu0 %v143
  %160 = vmatpush.msra.mxu0 %v78
  %161 = vmatmul.f32.gmra.mxu0 %v82
  %v162 = vpop.f32.mrf.mxu0
  %163 = vmatmul.f32.gmra.mxu0 %v85
  %v164 = vpop.f32.mrf.mxu0
  %v165 = vadd.f32 0.0, %v164
  %166 = vmatmul.f32.gmra.mxu0 %v88
  %v167 = vpop.f32.mrf.mxu0
  %v168 = vadd.f32 0.0, %v167
  %169 = vmatmul.f32.gmra.mxu0 %v91
  %v170 = vpop.f32.mrf.mxu0
  %v171 = vadd.f32 0.0, %v170
  %172 = vmatmul.f32.gmra.mxu0 %v94
  %v173 = vpop.f32.mrf.mxu0
  %v174 = vadd.f32 0.0, %v173
  %175 = vmatmul.f32.gmra.mxu0 %v97
  %v176 = vpop.f32.mrf.mxu0
  %v177 = vadd.f32 0.0, %v176
  %178 = vmatmul.f32.gmra.mxu0 %v100
  %v179 = vpop.f32.mrf.mxu0
  %v180 = vadd.f32 0.0, %v179
  %181 = vmatmul.f32.gmra.mxu0 %v103
  %v182 = vpop.f32.mrf.mxu0
  %v183 = vadd.f32 0.0, %v182
  %184 = vmatmul.f32.gmra.mxu0 %v106
  %v185 = vpop.f32.mrf.mxu0
  %v186 = vadd.f32 0.0, %v185
  %187 = vmatmul.f32.gmra.mxu0 %v109
  %v188 = vpop.f32.mrf.mxu0
  %189 = vmatmul.f32.gmra.mxu0 %v112
  %v190 = vpop.f32.mrf.mxu0
  %191 = vmatmul.f32.gmra.mxu0 %v115
  %v192 = vpop.f32.mrf.mxu0
  %v193 = vadd.f32 0.0, %v192
  %194 = vmatmul.f32.gmra.mxu0 %v118
  %v195 = vpop.f32.mrf.mxu0
  %v196 = vadd.f32 0.0, %v195
  %197 = vmatmul.f32.gmra.mxu0 %v121
  %v198 = vpop.f32.mrf.mxu0
  %v199 = vadd.f32 0.0, %v198
  %200 = vmatmul.f32.gmra.mxu0 %v124
  %v201 = vpop.f32.mrf.mxu0
  %v202 = vadd.f32 0.0, %v201
  %203 = vmatmul.f32.gmra.mxu0 %v127
  %v204 = vpop.f32.mrf.mxu0
  %v205 = vadd.f32 0.0, %v204
  %206 = vmatmul.f32.gmra.mxu0 %v130
  %v207 = vpop.f32.mrf.mxu0
  %v208 = vadd.f32 0.0, %v207
  %209 = vmatmul.f32.gmra.mxu0 %v133
  %v210 = vpop.f32.mrf.mxu0
  %v211 = vadd.f32 0.0, %v210
  %212 = vmatmul.f32.gmra.mxu0 %v136
  %v213 = vpop.f32.mrf.mxu0
  %v214 = vadd.f32 0.0, %v213
  %215 = vmatmul.f32.gmra.mxu0 %v139
  %v216 = vpop.f32.mrf.mxu0
  %217 = vdwg.mxu0
  %v219 = vsel %vm80, %v35, 0
  %v222 = vsel %vm80, %v36, 0
  %v225 = vsel %vm80, %v37, 0
  %v228 = vsel %vm80, %v38, 0
  %v231 = vsel %vm80, %v39, 0
  %v234 = vsel %vm80, %v40, 0
  %v237 = vsel %vm80, %v41, 0
  %v240 = vsel %vm80, %v42, 0
  %v243 = vsel %vm80, %v43, 0
  %v246 = vsel %vm80, %v44, 0
  %v249 = vsel %vm80, %v45, 0
  %v252 = vsel %vm80, %v46, 0
  %v255 = vsel %vm80, %v47, 0
  %v258 = vsel %vm80, %v48, 0
  %v261 = vsel %vm80, %v49, 0
  %v264 = vsel %vm80, %v50, 0
  %v267 = vsel %vm80, %v51, 0
  %v270 = vsel %vm80, %v52, 0
  %v273 = vsel %vm80, %v53, 0
  %v276 = vsel %vm80, %v54, 0
  %v279 = vsel %vm141, %v56, 0
  %281 = vmatpush.msra.mxu0 0.0
  %282 = vmatpush.msra.mxu0 0.0
  %283 = vmatpush.msra.mxu0 0.0
  %284 = vmatpush.msra.mxu0 0.0
  %285 = vmatpush.msra.mxu0 0.0
  %286 = vmatpush.msra.mxu0 0.0
  %287 = vmatpush.msra.mxu0 0.0
  %288 = vmatpush.msra.mxu0 0.0
  %289 = vmatpush.msra.mxu0 0.0
  %290 = vmatpush.msra.mxu0 0.0
  %291 = vmatpush.msra.mxu0 0.0
  %292 = vmatpush.msra.mxu0 0.0
  %293 = vmatpush.msra.mxu0 0.0
  %294 = vmatpush.msra.mxu0 0.0
  %295 = vmatpush.msra.mxu0 %v279
  %296 = vmatpush.msra.mxu0 %v55
  %297 = vmatmul.f32.gmra.mxu0 %v219
  %v298 = vpop.f32.mrf.mxu0
  %299 = vmatmul.f32.gmra.mxu0 %v222
  %v300 = vpop.f32.mrf.mxu0
  %v301 = vadd.f32 %v165, %v300
  %302 = vmatmul.f32.gmra.mxu0 %v225
  %v303 = vpop.f32.mrf.mxu0
  %v304 = vadd.f32 %v168, %v303
  %305 = vmatmul.f32.gmra.mxu0 %v228
  %v306 = vpop.f32.mrf.mxu0
  %v307 = vadd.f32 %v171, %v306
  %308 = vmatmul.f32.gmra.mxu0 %v231
  %v309 = vpop.f32.mrf.mxu0
  %v310 = vadd.f32 %v174, %v309
  %311 = vmatmul.f32.gmra.mxu0 %v234
  %v312 = vpop.f32.mrf.mxu0
  %v313 = vadd.f32 %v177, %v312
  %314 = vmatmul.f32.gmra.mxu0 %v237
  %v315 = vpop.f32.mrf.mxu0
  %v316 = vadd.f32 %v180, %v315
  %317 = vmatmul.f32.gmra.mxu0 %v240
  %v318 = vpop.f32.mrf.mxu0
  %v319 = vadd.f32 %v183, %v318
  %320 = vmatmul.f32.gmra.mxu0 %v243
  %v321 = vpop.f32.mrf.mxu0
  %v322 = vadd.f32 %v186, %v321
  %323 = vmatmul.f32.gmra.mxu0 %v246
  %v324 = vpop.f32.mrf.mxu0
  %325 = vmatmul.f32.gmra.mxu0 %v249
  %v326 = vpop.f32.mrf.mxu0
  %327 = vmatmul.f32.gmra.mxu0 %v252
  %v328 = vpop.f32.mrf.mxu0
  %v329 = vadd.f32 %v193, %v328
  %330 = vmatmul.f32.gmra.mxu0 %v255
  %v331 = vpop.f32.mrf.mxu0
  %v332 = vadd.f32 %v196, %v331
  %333 = vmatmul.f32.gmra.mxu0 %v258
  %v334 = vpop.f32.mrf.mxu0
  %v335 = vadd.f32 %v199, %v334
  %336 = vmatmul.f32.gmra.mxu0 %v261
  %v337 = vpop.f32.mrf.mxu0
  %v338 = vadd.f32 %v202, %v337
  %339 = vmatmul.f32.gmra.mxu0 %v264
  %v340 = vpop.f32.mrf.mxu0
  %v341 = vadd.f32 %v205, %v340
  %342 = vmatmul.f32.gmra.mxu0 %v267
  %v343 = vpop.f32.mrf.mxu0
  %v344 = vadd.f32 %v208, %v343
  %345 = vmatmul.f32.gmra.mxu0 %v270
  %v346 = vpop.f32.mrf.mxu0
  %v347 = vadd.f32 %v211, %v346
  %348 = vmatmul.f32.gmra.mxu0 %v273
  %v349 = vpop.f32.mrf.mxu0
  %v350 = vadd.f32 %v214, %v349
  %351 = vmatmul.f32.gmra.mxu0 %v276
  %v352 = vpop.f32.mrf.mxu0
  %353 = vdwg.mxu0
  %v354 = vld [vmem:[%s1 + $0xa] sm:$0xff]
  %v355 = vld [vmem:[%s1 + $0x12] sm:$0xff]
  %v356 = vld [vmem:[%s1 + $0x1a] sm:$0xff]
  %v357 = vld [vmem:[%s1 + $0x22] sm:$0xff]
  %v358 = vld [vmem:[%s1 + $0x2a] sm:$0xff]
  %v359 = vld [vmem:[%s1 + $0x32] sm:$0xff]
  %v360 = vld [vmem:[%s1 + $0x3a] sm:$0xff]
  %v361 = vld [vmem:[%s1 + $0x42] sm:$0xff]
  %v362 = vld [vmem:[%s1 + $0x4a] sm:$0xff]
  %v363 = vld [vmem:[%s1 + $0x52] sm:$0xff]
  %v364 = vld [vmem:[%s1 + $0x5a] sm:$0xff]
  %v365 = vld [vmem:[%s1 + $0x62] sm:$0xff]
  %v366 = vld [vmem:[%s1 + $0x6a] sm:$0xff]
  %v367 = vld [vmem:[%s1 + $0x72] sm:$0xff]
  %v368 = vld [vmem:[%s1 + $0x7a] sm:$0xff]
  %v369 = vld [vmem:[%s1 + $0x82] sm:$0xff]
  %v370 = vld [vmem:[%s1 + $0x8a] sm:$0xff]
  %v371 = vld [vmem:[%s1 + $0x92] sm:$0xff]
  %v372 = vld [vmem:[%s1 + $0x9a] sm:$0xff]
  %v373 = vld [vmem:[%s1 + $0xa2] sm:$0xff]
  %s374 = scalar_lea.vmem %s5, 32
  %v375 = vld [vmem:[%s374] sm:$0xff]
  %v376 = vld [vmem:[%s374 + $0x8] sm:$0x1]
  %v378 = vsel %vm80, %v354, 0
  %v381 = vsel %vm80, %v355, 0
  %v384 = vsel %vm80, %v356, 0
  %v387 = vsel %vm80, %v357, 0
  %v390 = vsel %vm80, %v358, 0
  %v393 = vsel %vm80, %v359, 0
  %v396 = vsel %vm80, %v360, 0
  %v399 = vsel %vm80, %v361, 0
  %v402 = vsel %vm80, %v362, 0
  %v405 = vsel %vm80, %v363, 0
  %v408 = vsel %vm80, %v364, 0
  %v411 = vsel %vm80, %v365, 0
  %v414 = vsel %vm80, %v366, 0
  %v417 = vsel %vm80, %v367, 0
  %v420 = vsel %vm80, %v368, 0
  %v423 = vsel %vm80, %v369, 0
  %v426 = vsel %vm80, %v370, 0
  %v429 = vsel %vm80, %v371, 0
  %v432 = vsel %vm80, %v372, 0
  %v435 = vsel %vm80, %v373, 0
  %v438 = vsel %vm141, %v376, 0
  %440 = vmatpush.msra.mxu0 0.0
  %441 = vmatpush.msra.mxu0 0.0
  %442 = vmatpush.msra.mxu0 0.0
  %443 = vmatpush.msra.mxu0 0.0
  %444 = vmatpush.msra.mxu0 0.0
  %445 = vmatpush.msra.mxu0 0.0
  %446 = vmatpush.msra.mxu0 0.0
  %447 = vmatpush.msra.mxu0 0.0
  %448 = vmatpush.msra.mxu0 0.0
  %449 = vmatpush.msra.mxu0 0.0
  %450 = vmatpush.msra.mxu0 0.0
  %451 = vmatpush.msra.mxu0 0.0
  %452 = vmatpush.msra.mxu0 0.0
  %453 = vmatpush.msra.mxu0 0.0
  %454 = vmatpush.msra.mxu0 %v438
  %455 = vmatpush.msra.mxu0 %v375
  %456 = vmatmul.f32.gmra.mxu0 %v378
  %v457 = vpop.f32.mrf.mxu0
  %458 = vmatmul.f32.gmra.mxu0 %v381
  %v459 = vpop.f32.mrf.mxu0
  %v460 = vadd.f32 0.0, %v459
  %461 = vmatmul.f32.gmra.mxu0 %v384
  %v462 = vpop.f32.mrf.mxu0
  %v463 = vadd.f32 0.0, %v462
  %464 = vmatmul.f32.gmra.mxu0 %v387
  %v465 = vpop.f32.mrf.mxu0
  %v466 = vadd.f32 0.0, %v465
  %467 = vmatmul.f32.gmra.mxu0 %v390
  %v468 = vpop.f32.mrf.mxu0
  %v469 = vadd.f32 0.0, %v468
  %470 = vmatmul.f32.gmra.mxu0 %v393
  %v471 = vpop.f32.mrf.mxu0
  %v472 = vadd.f32 0.0, %v471
  %473 = vmatmul.f32.gmra.mxu0 %v396
  %v474 = vpop.f32.mrf.mxu0
  %v475 = vadd.f32 0.0, %v474
  %476 = vmatmul.f32.gmra.mxu0 %v399
  %v477 = vpop.f32.mrf.mxu0
  %v478 = vadd.f32 0.0, %v477
  %479 = vmatmul.f32.gmra.mxu0 %v402
  %v480 = vpop.f32.mrf.mxu0
  %v481 = vadd.f32 0.0, %v480
  %482 = vmatmul.f32.gmra.mxu0 %v405
  %v483 = vpop.f32.mrf.mxu0
  %484 = vmatmul.f32.gmra.mxu0 %v408
  %v485 = vpop.f32.mrf.mxu0
  %486 = vmatmul.f32.gmra.mxu0 %v411
  %v487 = vpop.f32.mrf.mxu0
  %v488 = vadd.f32 0.0, %v487
  %489 = vmatmul.f32.gmra.mxu0 %v414
  %v490 = vpop.f32.mrf.mxu0
  %v491 = vadd.f32 0.0, %v490
  %492 = vmatmul.f32.gmra.mxu0 %v417
  %v493 = vpop.f32.mrf.mxu0
  %v494 = vadd.f32 0.0, %v493
  %495 = vmatmul.f32.gmra.mxu0 %v420
  %v496 = vpop.f32.mrf.mxu0
  %v497 = vadd.f32 0.0, %v496
  %498 = vmatmul.f32.gmra.mxu0 %v423
  %v499 = vpop.f32.mrf.mxu0
  %v500 = vadd.f32 0.0, %v499
  %501 = vmatmul.f32.gmra.mxu0 %v426
  %v502 = vpop.f32.mrf.mxu0
  %v503 = vadd.f32 0.0, %v502
  %504 = vmatmul.f32.gmra.mxu0 %v429
  %v505 = vpop.f32.mrf.mxu0
  %v506 = vadd.f32 0.0, %v505
  %507 = vmatmul.f32.gmra.mxu0 %v432
  %v508 = vpop.f32.mrf.mxu0
  %v509 = vadd.f32 0.0, %v508
  %510 = vmatmul.f32.gmra.mxu0 %v435
  %v511 = vpop.f32.mrf.mxu0
  %512 = vdwg.mxu0
  %v513 = vadd.f32 %v301, %v460
  %v514 = vadd.f32 %v304, %v463
  %v515 = vadd.f32 %v307, %v466
  %v516 = vadd.f32 %v310, %v469
  %v517 = vadd.f32 %v313, %v472
  %v518 = vadd.f32 %v316, %v475
  %v519 = vadd.f32 %v319, %v478
  %v520 = vadd.f32 %v322, %v481
  %v521 = vadd.f32 %v329, %v488
  %v522 = vadd.f32 %v332, %v491
  %v523 = vadd.f32 %v335, %v494
  %v524 = vadd.f32 %v338, %v497
  %v525 = vadd.f32 %v341, %v500
  %v526 = vadd.f32 %v344, %v503
  %v527 = vadd.f32 %v347, %v506
  %v528 = vadd.f32 %v350, %v509
  %v529 = vld [vmem:[%s6] sm:$0x1]
  %v531 = vperm.slane %v529, 0
  %v533 = vadd.f32 %v513, %v531
  %v534 = vadd.f32 %v514, %v531
  %v535 = vadd.f32 %v515, %v531
  %v536 = vadd.f32 %v516, %v531
  %v537 = vadd.f32 %v517, %v531
  %v538 = vadd.f32 %v518, %v531
  %v539 = vadd.f32 %v519, %v531
  %v540 = vadd.f32 %v520, %v531
  %v541 = vadd.f32 %v521, %v531
  %v542 = vadd.f32 %v522, %v531
  %v543 = vadd.f32 %v523, %v531
  %v544 = vadd.f32 %v524, %v531
  %v545 = vadd.f32 %v525, %v531
  %v546 = vadd.f32 %v526, %v531
  %v547 = vadd.f32 %v527, %v531
  %v548 = vadd.f32 %v528, %v531
  %v549 = vmax.f32 %v533, 0.0
  %v550 = vmax.f32 %v534, 0.0
  %v551 = vmax.f32 %v535, 0.0
  %v552 = vmax.f32 %v536, 0.0
  %v553 = vmax.f32 %v537, 0.0
  %v554 = vmax.f32 %v538, 0.0
  %v555 = vmax.f32 %v539, 0.0
  %v556 = vmax.f32 %v540, 0.0
  %v557 = vmax.f32 %v541, 0.0
  %v558 = vmax.f32 %v542, 0.0
  %v559 = vmax.f32 %v543, 0.0
  %v560 = vmax.f32 %v544, 0.0
  %v561 = vmax.f32 %v545, 0.0
  %v562 = vmax.f32 %v546, 0.0
  %v563 = vmax.f32 %v547, 0.0
  %v564 = vmax.f32 %v548, 0.0
  %vm565 = vcmask 162816
  %566 = vst.msk [vmem:[#allocation3] sm:$0xff] %vm565, 0.0
  %567 = vst.msk [vmem:[#allocation3 + $0x8] sm:$0xff] %vm565, 0.0
  %568 = vst.msk [vmem:[#allocation3 + $0x10] sm:$0xff] %vm565, 0.0
  %569 = vst.msk [vmem:[#allocation3 + $0x18] sm:$0xff] %vm565, 0.0
  %570 = vst.msk [vmem:[#allocation3 + $0x20] sm:$0xff] %vm565, 0.0
  %571 = vst.msk [vmem:[#allocation3 + $0x28] sm:$0xff] %vm565, 0.0
  %572 = vst.msk [vmem:[#allocation3 + $0x30] sm:$0xff] %vm565, 0.0
  %573 = vst.msk [vmem:[#allocation3 + $0x38] sm:$0xff] %vm565, 0.0
  %574 = vst.msk [vmem:[#allocation3 + $0x40] sm:$0xff] %vm565, 0.0
  %575 = vst.msk [vmem:[#allocation3 + $0x48] sm:$0xff] %vm565, 0.0
  %576 = vst.msk [vmem:[#allocation3 + $0x50] sm:$0xff] %vm565, 0.0
  %577 = vst.msk [vmem:[#allocation3 + $0x58] sm:$0xff] %vm565, 0.0
  %578 = vst.msk [vmem:[#allocation3 + $0x60] sm:$0xff] %vm565, 0.0
  %579 = vst.msk [vmem:[#allocation3 + $0x68] sm:$0xff] %vm565, 0.0
  %580 = vst.msk [vmem:[#allocation3 + $0x70] sm:$0xff] %vm565, 0.0
  %581 = vst.msk [vmem:[#allocation3 + $0x78] sm:$0xff] %vm565, 0.0
  %582 = vst.msk [vmem:[#allocation3 + $0x80] sm:$0xff] %vm565, 0.0
  %583 = vst.msk [vmem:[#allocation3 + $0x88] sm:$0xff] %vm565, 0.0
  %584 = vst.msk [vmem:[#allocation3 + $0x90] sm:$0xff] %vm565, 0.0
  %585 = vst.msk [vmem:[#allocation3 + $0x98] sm:$0xff] %vm565, 0.0
  %586 = vst.msk [vmem:[#allocation3 + $0xa0] sm:$0xff] %vm565, 0.0
  %587 = vst.msk [vmem:[#allocation3 + $0xa8] sm:$0xff] %vm565, 0.0
  %vm588 = vcmask 138240
  %589 = vst.msk [vmem:[#allocation3 + $0x10] sm:$0xff] %vm588, %v549
  %590 = vst.msk [vmem:[#allocation3 + $0x18] sm:$0xff] %vm588, %v550
  %591 = vst.msk [vmem:[#allocation3 + $0x20] sm:$0xff] %vm588, %v551
  %592 = vst.msk [vmem:[#allocation3 + $0x28] sm:$0xff] %vm588, %v552
  %593 = vst.msk [vmem:[#allocation3 + $0x30] sm:$0xff] %vm588, %v553
  %594 = vst.msk [vmem:[#allocation3 + $0x38] sm:$0xff] %vm588, %v554
  %595 = vst.msk [vmem:[#allocation3 + $0x40] sm:$0xff] %vm588, %v555
  %596 = vst.msk [vmem:[#allocation3 + $0x48] sm:$0xff] %vm588, %v556
  %597 = vst.msk [vmem:[#allocation3 + $0x60] sm:$0xff] %vm588, %v557
  %598 = vst.msk [vmem:[#allocation3 + $0x68] sm:$0xff] %vm588, %v558
  %599 = vst.msk [vmem:[#allocation3 + $0x70] sm:$0xff] %vm588, %v559
  %600 = vst.msk [vmem:[#allocation3 + $0x78] sm:$0xff] %vm588, %v560
  %601 = vst.msk [vmem:[#allocation3 + $0x80] sm:$0xff] %vm588, %v561
  %602 = vst.msk [vmem:[#allocation3 + $0x88] sm:$0xff] %vm588, %v562
  %603 = vst.msk [vmem:[#allocation3 + $0x90] sm:$0xff] %vm588, %v563
  %604 = vst.msk [vmem:[#allocation3 + $0x98] sm:$0xff] %vm588, %v564
  %v605 = vld [vmem:[%s3] sm:$0x7]
  %v606 = vperm.slane %v605, 0
  %v607 = vperm.slane %v605, 1
  %v608 = vperm.slane %v605, 2
  %v609 = vld [vmem:[%s4] sm:$0x1]
  %v611 = vperm.slane %v609, 0
  loop: start=0, step=1, limit=8
  $region42: #{cnn_block_forward.1} parent=0 // loop_pre_header
    _
  $region43: #{cnn_block_forward.1} parent=0 // loop_header
    %s613 = sphi 0, %s617
    %p614 = scmp.ge.s32.totalorder %s613, 8
    %v618 = vphi 0.0, %v1194
  $region44: #{cnn_block_forward.1} parent=0 // loop_header_branch
    %616 = sbr.rel (%p614) target = $region48
  $region45: #{cnn_block_forward.1} parent=0 // loop_body
    %s619 = smul.u32 %s613, 16
    %s620 = scalar_lea.vmem %s2, %s619
    %v621 = vld [vmem:[%s620] sm:$0xff]
    %v622 = vld [vmem:[%s620 + $0x8] sm:$0xff]
    %624 = vset.pattern.permute.xlu0 3
    %625 = vperm.xlu0 %624, %v618
    %v626 = vpop.permute.xlu0 %625
    %v628 = vmul.f32 %v626, %v606
    %629 = vset.pattern.permute.xlu0 4
    %630 = vperm.xlu0 %629, %v618
    %v631 = vpop.permute.xlu0 %630
    %v633 = vmul.f32 %v631, %v607
    %v634 = vadd.f32 %v628, %v633
    %635 = vset.pattern.permute.xlu0 5
    %636 = vperm.xlu0 %635, %v618
    %v637 = vpop.permute.xlu0 %636
    %v639 = vmul.f32 %v637, %v608
    %v640 = vadd.f32 %v634, %v639
    %v642 = vrot.slane %v640, 6
    %v644 = vadd.f32 %v621, %v642
    %v645 = vxor.u32 %v644, 2147483648
    %v646 = vmul.f32 %v645, 1.442695
    %v647 = vpow.pop %v646
    %v648 = vadd.f32 %v647, 1.0
    %v649 = vrcp.pop %v648
    %v650 = vmul.f32 %v648, %v649
    %v651 = vsub.f32 1.0, %v650
    %v652 = vmul.f32 %v649, %v651
    %v653 = vadd.f32 %v649, %v652
    %vm654 = vweird.f32 %v648
    %vm655 = vweird.f32 %v649
    %vm656 = vmor %vm654, %vm655
    %v657 = vsel %vm656, %v649, %v653
    %v658 = vand.u32 2147483647, %v648
    %vm659 = vcmp.eq.f32.partialorder %v658, 8.507059e+37
    %v660 = vand.u32 %v648, 2147483648
    %v661 = vor.u32 1.1754944e-38, %v660
    %v662 = vsel %vm659, %v661, %v657
    %v663 = vmul.f32 1.0, %v662
    %664 = vrot.lane.b32.xlu0 %v611, 6
    %v665 = vpop.permute.xlu0 %664
    %v667 = vadd.f32 %v640, %v665
    %v669 = vrot.slane %v667, 6
    %670 = vrot.lane.b32.xlu0 %v669, 122
    %v671 = vpop.permute.xlu0 %670
    %v673 = vmul.f32 %v663, %v671
    %675 = vrot.lane.b32.xlu0 %v673, 6
    %v676 = vpop.permute.xlu0 %675
    %v678 = vadd.f32 %v621, %v676
    %v679 = vtanh.pop %v678
    %v680 = vsub.f32 1.0, %v663
    %682 = vrot.lane.b32.xlu0 %v679, 125
    %v683 = vpop.permute.xlu0 %682
    %v685 = vmul.f32 %v680, %v683
    %v686 = vrot.slane %v618, 6
    %v688 = vmul.f32 %v663, %v686
    %v689 = vadd.f32 %v685, %v688
    %v690 = vmax.f32 %v689, 0.0
    %692 = vrot.lane.b32.xlu0 %v690, 125
    %v693 = vpop.permute.xlu0 %692
    %v695 = vrot.slane %v690, 1
    %vm697 = vcmask 23552
    %v698 = vsel %vm697, %v693, %v695
    %700 = vset.pattern.permute.xlu0 3
    %701 = vperm.xlu0 %700, %v689
    %v702 = vpop.permute.xlu0 %701
    %v704 = vmul.f32 %v702, %v606
    %705 = vset.pattern.permute.xlu0 4
    %706 = vperm.xlu0 %705, %v689
    %v707 = vpop.permute.xlu0 %706
    %v709 = vmul.f32 %v707, %v607
    %v710 = vadd.f32 %v704, %v709
    %711 = vset.pattern.permute.xlu0 5
    %712 = vperm.xlu0 %711, %v689
    %v713 = vpop.permute.xlu0 %712
    %v715 = vmul.f32 %v713, %v608
    %v716 = vadd.f32 %v710, %v715
    %v718 = vrot.slane %v716, 6
    %v720 = vadd.f32 %v621, %v718
    %v721 = vxor.u32 %v720, 2147483648
    %v722 = vmul.f32 %v721, 1.442695
    %v723 = vpow.pop %v722
    %v724 = vadd.f32 %v723, 1.0
    %v725 = vrcp.pop %v724
    %v726 = vmul.f32 %v724, %v725
    %v727 = vsub.f32 1.0, %v726
    %v728 = vmul.f32 %v725, %v727
    %v729 = vadd.f32 %v725, %v728
    %vm730 = vweird.f32 %v724
    %vm731 = vweird.f32 %v725
    %vm732 = vmor %vm730, %vm731
    %v733 = vsel %vm732, %v725, %v729
    %v734 = vand.u32 2147483647, %v724
    %vm735 = vcmp.eq.f32.partialorder %v734, 8.507059e+37
    %v736 = vand.u32 %v724, 2147483648
    %v737 = vor.u32 1.1754944e-38, %v736
    %v738 = vsel %vm735, %v737, %v733
    %v739 = vmul.f32 1.0, %v738
    %v740 = vadd.f32 %v716, %v665
    %v742 = vrot.slane %v740, 6
    %743 = vrot.lane.b32.xlu0 %v742, 122
    %v744 = vpop.permute.xlu0 %743
    %v746 = vmul.f32 %v739, %v744
    %748 = vrot.lane.b32.xlu0 %v746, 6
    %v749 = vpop.permute.xlu0 %748
    %v751 = vadd.f32 %v621, %v749
    %v752 = vtanh.pop %v751
    %v753 = vsub.f32 1.0, %v739
    %755 = vrot.lane.b32.xlu0 %v752, 125
    %v756 = vpop.permute.xlu0 %755
    %v758 = vmul.f32 %v753, %v756
    %v759 = vrot.slane %v689, 6
    %v761 = vmul.f32 %v739, %v759
    %v762 = vadd.f32 %v758, %v761
    %v763 = vmax.f32 %v762, 0.0
    %765 = vrot.lane.b32.xlu0 %v763, 125
    %v766 = vpop.permute.xlu0 %765
    %v768 = vrot.slane %v763, 1
    %v770 = vsel %vm697, %v766, %v768
    %772 = vset.pattern.permute.xlu0 3
    %773 = vperm.xlu0 %772, %v762
    %v774 = vpop.permute.xlu0 %773
    %v776 = vmul.f32 %v774, %v606
    %777 = vset.pattern.permute.xlu0 4
    %778 = vperm.xlu0 %777, %v762
    %v779 = vpop.permute.xlu0 %778
    %v781 = vmul.f32 %v779, %v607
    %v782 = vadd.f32 %v776, %v781
    %783 = vset.pattern.permute.xlu0 5
    %784 = vperm.xlu0 %783, %v762
    %v785 = vpop.permute.xlu0 %784
    %v787 = vmul.f32 %v785, %v608
    %v788 = vadd.f32 %v782, %v787
    %v790 = vrot.slane %v788, 6
    %v792 = vadd.f32 %v621, %v790
    %v793 = vxor.u32 %v792, 2147483648
    %v794 = vmul.f32 %v793, 1.442695
    %v795 = vpow.pop %v794
    %v796 = vadd.f32 %v795, 1.0
    %v797 = vrcp.pop %v796
    %v798 = vmul.f32 %v796, %v797
    %v799 = vsub.f32 1.0, %v798
    %v800 = vmul.f32 %v797, %v799
    %v801 = vadd.f32 %v797, %v800
    %vm802 = vweird.f32 %v796
    %vm803 = vweird.f32 %v797
    %vm804 = vmor %vm802, %vm803
    %v805 = vsel %vm804, %v797, %v801
    %v806 = vand.u32 2147483647, %v796
    %vm807 = vcmp.eq.f32.partialorder %v806, 8.507059e+37
    %v808 = vand.u32 %v796, 2147483648
    %v809 = vor.u32 1.1754944e-38, %v808
    %v810 = vsel %vm807, %v809, %v805
    %v811 = vmul.f32 1.0, %v810
    %v812 = vadd.f32 %v788, %v665
    %v814 = vrot.slane %v812, 6
    %815 = vrot.lane.b32.xlu0 %v814, 122
    %v816 = vpop.permute.xlu0 %815
    %v818 = vmul.f32 %v811, %v816
    %820 = vrot.lane.b32.xlu0 %v818, 6
    %v821 = vpop.permute.xlu0 %820
    %v823 = vadd.f32 %v621, %v821
    %v824 = vtanh.pop %v823
    %v825 = vsub.f32 1.0, %v811
    %827 = vrot.lane.b32.xlu0 %v824, 125
    %v828 = vpop.permute.xlu0 %827
    %v830 = vmul.f32 %v825, %v828
    %v831 = vrot.slane %v762, 6
    %v833 = vmul.f32 %v811, %v831
    %v834 = vadd.f32 %v830, %v833
    %v835 = vmax.f32 %v834, 0.0
    %837 = vrot.lane.b32.xlu0 %v835, 125
    %v838 = vpop.permute.xlu0 %837
    %v840 = vrot.slane %v835, 1
    %v842 = vsel %vm697, %v838, %v840
    %844 = vset.pattern.permute.xlu0 3
    %845 = vperm.xlu0 %844, %v834
    %v846 = vpop.permute.xlu0 %845
    %v848 = vmul.f32 %v846, %v606
    %849 = vset.pattern.permute.xlu0 4
    %850 = vperm.xlu0 %849, %v834
    %v851 = vpop.permute.xlu0 %850
    %v853 = vmul.f32 %v851, %v607
    %v854 = vadd.f32 %v848, %v853
    %855 = vset.pattern.permute.xlu0 5
    %856 = vperm.xlu0 %855, %v834
    %v857 = vpop.permute.xlu0 %856
    %v859 = vmul.f32 %v857, %v608
    %v860 = vadd.f32 %v854, %v859
    %v862 = vrot.slane %v860, 6
    %v864 = vadd.f32 %v621, %v862
    %v865 = vxor.u32 %v864, 2147483648
    %v866 = vmul.f32 %v865, 1.442695
    %v867 = vpow.pop %v866
    %v868 = vadd.f32 %v867, 1.0
    %v869 = vrcp.pop %v868
    %v870 = vmul.f32 %v868, %v869
    %v871 = vsub.f32 1.0, %v870
    %v872 = vmul.f32 %v869, %v871
    %v873 = vadd.f32 %v869, %v872
    %vm874 = vweird.f32 %v868
    %vm875 = vweird.f32 %v869
    %vm876 = vmor %vm874, %vm875
    %v877 = vsel %vm876, %v869, %v873
    %v878 = vand.u32 2147483647, %v868
    %vm879 = vcmp.eq.f32.partialorder %v878, 8.507059e+37
    %v880 = vand.u32 %v868, 2147483648
    %v881 = vor.u32 1.1754944e-38, %v880
    %v882 = vsel %vm879, %v881, %v877
    %v883 = vmul.f32 1.0, %v882
    %v884 = vadd.f32 %v860, %v665
    %v886 = vrot.slane %v884, 6
    %887 = vrot.lane.b32.xlu0 %v886, 122
    %v888 = vpop.permute.xlu0 %887
    %v890 = vmul.f32 %v883, %v888
    %892 = vrot.lane.b32.xlu0 %v890, 6
    %v893 = vpop.permute.xlu0 %892
    %v895 = vadd.f32 %v621, %v893
    %v896 = vtanh.pop %v895
    %v897 = vsub.f32 1.0, %v883
    %899 = vrot.lane.b32.xlu0 %v896, 125
    %v900 = vpop.permute.xlu0 %899
    %v902 = vmul.f32 %v897, %v900
    %v903 = vrot.slane %v834, 6
    %v905 = vmul.f32 %v883, %v903
    %v906 = vadd.f32 %v902, %v905
    %v907 = vmax.f32 %v906, 0.0
    %909 = vrot.lane.b32.xlu0 %v907, 125
    %v910 = vpop.permute.xlu0 %909
    %v912 = vrot.slane %v907, 1
    %v914 = vsel %vm697, %v910, %v912
    %916 = vset.pattern.permute.xlu0 3
    %917 = vperm.xlu0 %916, %v906
    %v918 = vpop.permute.xlu0 %917
    %v920 = vmul.f32 %v918, %v606
    %921 = vset.pattern.permute.xlu0 4
    %922 = vperm.xlu0 %921, %v906
    %v923 = vpop.permute.xlu0 %922
    %v925 = vmul.f32 %v923, %v607
    %v926 = vadd.f32 %v920, %v925
    %927 = vset.pattern.permute.xlu0 5
    %928 = vperm.xlu0 %927, %v906
    %v929 = vpop.permute.xlu0 %928
    %v931 = vmul.f32 %v929, %v608
    %v932 = vadd.f32 %v926, %v931
    %v934 = vrot.slane %v932, 6
    %v936 = vadd.f32 %v622, %v934
    %v937 = vxor.u32 %v936, 2147483648
    %v938 = vmul.f32 %v937, 1.442695
    %v939 = vpow.pop %v938
    %v940 = vadd.f32 %v939, 1.0
    %v941 = vrcp.pop %v940
    %v942 = vmul.f32 %v940, %v941
    %v943 = vsub.f32 1.0, %v942
    %v944 = vmul.f32 %v941, %v943
    %v945 = vadd.f32 %v941, %v944
    %vm946 = vweird.f32 %v940
    %vm947 = vweird.f32 %v941
    %vm948 = vmor %vm946, %vm947
    %v949 = vsel %vm948, %v941, %v945
    %v950 = vand.u32 2147483647, %v940
    %vm951 = vcmp.eq.f32.partialorder %v950, 8.507059e+37
    %v952 = vand.u32 %v940, 2147483648
    %v953 = vor.u32 1.1754944e-38, %v952
    %v954 = vsel %vm951, %v953, %v949
    %v955 = vmul.f32 1.0, %v954
    %v956 = vadd.f32 %v932, %v665
    %v958 = vrot.slane %v956, 6
    %959 = vrot.lane.b32.xlu0 %v958, 122
    %v960 = vpop.permute.xlu0 %959
    %v962 = vmul.f32 %v955, %v960
    %964 = vrot.lane.b32.xlu0 %v962, 6
    %v965 = vpop.permute.xlu0 %964
    %v967 = vadd.f32 %v622, %v965
    %v968 = vtanh.pop %v967
    %v969 = vsub.f32 1.0, %v955
    %971 = vrot.lane.b32.xlu0 %v968, 125
    %v972 = vpop.permute.xlu0 %971
    %v974 = vmul.f32 %v969, %v972
    %v975 = vrot.slane %v906, 6
    %v977 = vmul.f32 %v955, %v975
    %v978 = vadd.f32 %v974, %v977
    %v979 = vmax.f32 %v978, 0.0
    %981 = vrot.lane.b32.xlu0 %v979, 125
    %v982 = vpop.permute.xlu0 %981
    %v984 = vrot.slane %v979, 1
    %v986 = vsel %vm697, %v982, %v984
    %988 = vset.pattern.permute.xlu0 3
    %989 = vperm.xlu0 %988, %v978
    %v990 = vpop.permute.xlu0 %989
    %v992 = vmul.f32 %v990, %v606
    %993 = vset.pattern.permute.xlu0 4
    %994 = vperm.xlu0 %993, %v978
    %v995 = vpop.permute.xlu0 %994
    %v997 = vmul.f32 %v995, %v607
    %v998 = vadd.f32 %v992, %v997
    %999 = vset.pattern.permute.xlu0 5
    %1000 = vperm.xlu0 %999, %v978
    %v1001 = vpop.permute.xlu0 %1000
    %v1003 = vmul.f32 %v1001, %v608
    %v1004 = vadd.f32 %v998, %v1003
    %v1006 = vrot.slane %v1004, 6
    %v1008 = vadd.f32 %v622, %v1006
    %v1009 = vxor.u32 %v1008, 2147483648
    %v1010 = vmul.f32 %v1009, 1.442695
    %v1011 = vpow.pop %v1010
    %v1012 = vadd.f32 %v1011, 1.0
    %v1013 = vrcp.pop %v1012
    %v1014 = vmul.f32 %v1012, %v1013
    %v1015 = vsub.f32 1.0, %v1014
    %v1016 = vmul.f32 %v1013, %v1015
    %v1017 = vadd.f32 %v1013, %v1016
    %vm1018 = vweird.f32 %v1012
    %vm1019 = vweird.f32 %v1013
    %vm1020 = vmor %vm1018, %vm1019
    %v1021 = vsel %vm1020, %v1013, %v1017
    %v1022 = vand.u32 2147483647, %v1012
    %vm1023 = vcmp.eq.f32.partialorder %v1022, 8.507059e+37
    %v1024 = vand.u32 %v1012, 2147483648
    %v1025 = vor.u32 1.1754944e-38, %v1024
    %v1026 = vsel %vm1023, %v1025, %v1021
    %v1027 = vmul.f32 1.0, %v1026
    %v1028 = vadd.f32 %v1004, %v665
    %v1030 = vrot.slane %v1028, 6
    %1031 = vrot.lane.b32.xlu0 %v1030, 122
    %v1032 = vpop.permute.xlu0 %1031
    %v1034 = vmul.f32 %v1027, %v1032
    %1036 = vrot.lane.b32.xlu0 %v1034, 6
    %v1037 = vpop.permute.xlu0 %1036
    %v1039 = vadd.f32 %v622, %v1037
    %v1040 = vtanh.pop %v1039
    %v1041 = vsub.f32 1.0, %v1027
    %1043 = vrot.lane.b32.xlu0 %v1040, 125
    %v1044 = vpop.permute.xlu0 %1043
    %v1046 = vmul.f32 %v1041, %v1044
    %v1047 = vrot.slane %v978, 6
    %v1049 = vmul.f32 %v1027, %v1047
    %v1050 = vadd.f32 %v1046, %v1049
    %v1051 = vmax.f32 %v1050, 0.0
    %1053 = vrot.lane.b32.xlu0 %v1051, 125
    %v1054 = vpop.permute.xlu0 %1053
    %v1056 = vrot.slane %v1051, 1
    %v1058 = vsel %vm697, %v1054, %v1056
    %1060 = vset.pattern.permute.xlu0 3
    %1061 = vperm.xlu0 %1060, %v1050
    %v1062 = vpop.permute.xlu0 %1061
    %v1064 = vmul.f32 %v1062, %v606
    %1065 = vset.pattern.permute.xlu0 4
    %1066 = vperm.xlu0 %1065, %v1050
    %v1067 = vpop.permute.xlu0 %1066
    %v1069 = vmul.f32 %v1067, %v607
    %v1070 = vadd.f32 %v1064, %v1069
    %1071 = vset.pattern.permute.xlu0 5
    %1072 = vperm.xlu0 %1071, %v1050
    %v1073 = vpop.permute.xlu0 %1072
    %v1075 = vmul.f32 %v1073, %v608
    %v1076 = vadd.f32 %v1070, %v1075
    %v1078 = vrot.slane %v1076, 6
    %v1080 = vadd.f32 %v622, %v1078
    %v1081 = vxor.u32 %v1080, 2147483648
    %v1082 = vmul.f32 %v1081, 1.442695
    %v1083 = vpow.pop %v1082
    %v1084 = vadd.f32 %v1083, 1.0
    %v1085 = vrcp.pop %v1084
    %v1086 = vmul.f32 %v1084, %v1085
    %v1087 = vsub.f32 1.0, %v1086
    %v1088 = vmul.f32 %v1085, %v1087
    %v1089 = vadd.f32 %v1085, %v1088
    %vm1090 = vweird.f32 %v1084
    %vm1091 = vweird.f32 %v1085
    %vm1092 = vmor %vm1090, %vm1091
    %v1093 = vsel %vm1092, %v1085, %v1089
    %v1094 = vand.u32 2147483647, %v1084
    %vm1095 = vcmp.eq.f32.partialorder %v1094, 8.507059e+37
    %v1096 = vand.u32 %v1084, 2147483648
    %v1097 = vor.u32 1.1754944e-38, %v1096
    %v1098 = vsel %vm1095, %v1097, %v1093
    %v1099 = vmul.f32 1.0, %v1098
    %v1100 = vadd.f32 %v1076, %v665
    %v1102 = vrot.slane %v1100, 6
    %1103 = vrot.lane.b32.xlu0 %v1102, 122
    %v1104 = vpop.permute.xlu0 %1103
    %v1106 = vmul.f32 %v1099, %v1104
    %1108 = vrot.lane.b32.xlu0 %v1106, 6
    %v1109 = vpop.permute.xlu0 %1108
    %v1111 = vadd.f32 %v622, %v1109
    %v1112 = vtanh.pop %v1111
    %v1113 = vsub.f32 1.0, %v1099
    %1115 = vrot.lane.b32.xlu0 %v1112, 125
    %v1116 = vpop.permute.xlu0 %1115
    %v1118 = vmul.f32 %v1113, %v1116
    %v1119 = vrot.slane %v1050, 6
    %v1121 = vmul.f32 %v1099, %v1119
    %v1122 = vadd.f32 %v1118, %v1121
    %v1123 = vmax.f32 %v1122, 0.0
    %1125 = vrot.lane.b32.xlu0 %v1123, 125
    %v1126 = vpop.permute.xlu0 %1125
    %v1128 = vrot.slane %v1123, 1
    %v1130 = vsel %vm697, %v1126, %v1128
    %1132 = vset.pattern.permute.xlu0 3
    %1133 = vperm.xlu0 %1132, %v1122
    %v1134 = vpop.permute.xlu0 %1133
    %v1136 = vmul.f32 %v1134, %v606
    %1137 = vset.pattern.permute.xlu0 4
    %1138 = vperm.xlu0 %1137, %v1122
    %v1139 = vpop.permute.xlu0 %1138
    %v1141 = vmul.f32 %v1139, %v607
    %v1142 = vadd.f32 %v1136, %v1141
    %1143 = vset.pattern.permute.xlu0 5
    %1144 = vperm.xlu0 %1143, %v1122
    %v1145 = vpop.permute.xlu0 %1144
    %v1147 = vmul.f32 %v1145, %v608
    %v1148 = vadd.f32 %v1142, %v1147
    %v1150 = vrot.slane %v1148, 6
    %v1152 = vadd.f32 %v622, %v1150
    %v1153 = vxor.u32 %v1152, 2147483648
    %v1154 = vmul.f32 %v1153, 1.442695
    %v1155 = vpow.pop %v1154
    %v1156 = vadd.f32 %v1155, 1.0
    %v1157 = vrcp.pop %v1156
    %v1158 = vmul.f32 %v1156, %v1157
    %v1159 = vsub.f32 1.0, %v1158
    %v1160 = vmul.f32 %v1157, %v1159
    %v1161 = vadd.f32 %v1157, %v1160
    %vm1162 = vweird.f32 %v1156
    %vm1163 = vweird.f32 %v1157
    %vm1164 = vmor %vm1162, %vm1163
    %v1165 = vsel %vm1164, %v1157, %v1161
    %v1166 = vand.u32 2147483647, %v1156
    %vm1167 = vcmp.eq.f32.partialorder %v1166, 8.507059e+37
    %v1168 = vand.u32 %v1156, 2147483648
    %v1169 = vor.u32 1.1754944e-38, %v1168
    %v1170 = vsel %vm1167, %v1169, %v1165
    %v1171 = vmul.f32 1.0, %v1170
    %v1172 = vadd.f32 %v1148, %v665
    %v1174 = vrot.slane %v1172, 6
    %1175 = vrot.lane.b32.xlu0 %v1174, 122
    %v1176 = vpop.permute.xlu0 %1175
    %v1178 = vmul.f32 %v1171, %v1176
    %1180 = vrot.lane.b32.xlu0 %v1178, 6
    %v1181 = vpop.permute.xlu0 %1180
    %v1183 = vadd.f32 %v622, %v1181
    %v1184 = vtanh.pop %v1183
    %v1185 = vsub.f32 1.0, %v1171
    %1187 = vrot.lane.b32.xlu0 %v1184, 125
    %v1188 = vpop.permute.xlu0 %1187
    %v1190 = vmul.f32 %v1185, %v1188
    %v1191 = vrot.slane %v1122, 6
    %v1193 = vmul.f32 %v1171, %v1191
    %v1194 = vadd.f32 %v1190, %v1193
    %v1195 = vmax.f32 %v1194, 0.0
    %1197 = vrot.lane.b32.xlu0 %v1195, 125
    %v1198 = vpop.permute.xlu0 %1197
    %v1200 = vrot.slane %v1195, 1
    %v1202 = vsel %vm697, %v1198, %v1200
    %v1204 = vrot.slane %v770, 1
    %v1207 = vrot.slane %v842, 2
    %v1210 = vrot.slane %v914, 3
    %v1213 = vrot.slane %v986, 4
    %v1216 = vrot.slane %v1058, 5
    %v1219 = vrot.slane %v1130, 6
    %v1222 = vrot.slane %v1202, 7
    %v1224 = vsel %vm141, %v698, %v1204
    %vm1225 = vcmask 1041408
    %v1226 = vsel %vm1225, %v1224, %v1207
    %vm1227 = vcmask 1042432
    %v1228 = vsel %vm1227, %v1226, %v1210
    %vm1229 = vcmask 1043456
    %v1230 = vsel %vm1229, %v1228, %v1213
    %vm1231 = vcmask 1044480
    %v1232 = vsel %vm1231, %v1230, %v1216
    %vm1233 = vcmask 1045504
    %v1234 = vsel %vm1233, %v1232, %v1219
    %vm1235 = vcmask 1046528
    %v1236 = vsel %vm1235, %v1234, %v1222
    %s1237 = smul.u32 %s613, 8
    %s1238 = scalar_lea.vmem [#allocation2], %s1237
    %vm1239 = vcmask 48128
    %1240 = vst.msk [vmem:[%s1238] sm:$0xff] %vm1239, %v1236
  $region46: #{cnn_block_forward.1} parent=0 // loop_footer
    %s617 = sadd.s32 1, %s613
  $region47: #{cnn_block_forward.1} parent=0 // loop_footer_branch
    %612 = sbr.rel target = $region43
  $region48: #{cnn_block_forward.1} parent=0 // loop_exit
    _
  %v1241 = vld [vmem:[#allocation2] sm:$0xff]
  %v1242 = vld [vmem:[#allocation2 + $0x8] sm:$0xff]
  %v1243 = vld [vmem:[#allocation2 + $0x10] sm:$0xff]
  %v1244 = vld [vmem:[#allocation2 + $0x18] sm:$0xff]
  %v1245 = vld [vmem:[#allocation2 + $0x20] sm:$0xff]
  %v1246 = vld [vmem:[#allocation2 + $0x28] sm:$0xff]
  %v1247 = vld [vmem:[#allocation2 + $0x30] sm:$0xff]
  %v1248 = vld [vmem:[#allocation2 + $0x38] sm:$0xff]
  %1257 = vrot.lane.b32.xlu0 %v1241, 17
  %v1258 = vpop.permute.xlu0 %1257
  %1259 = vrot.lane.b32.xlu0 %v1242, 17
  %v1260 = vpop.permute.xlu0 %1259
  %1261 = vrot.lane.b32.xlu0 %v1243, 17
  %v1262 = vpop.permute.xlu0 %1261
  %1263 = vrot.lane.b32.xlu0 %v1244, 17
  %v1264 = vpop.permute.xlu0 %1263
  %1265 = vrot.lane.b32.xlu0 %v1245, 17
  %v1266 = vpop.permute.xlu0 %1265
  %1267 = vrot.lane.b32.xlu0 %v1246, 17
  %v1268 = vpop.permute.xlu0 %1267
  %1269 = vrot.lane.b32.xlu0 %v1247, 17
  %v1270 = vpop.permute.xlu0 %1269
  %1271 = vrot.lane.b32.xlu0 %v1248, 17
  %v1272 = vpop.permute.xlu0 %1271
  %vm1281 = vcmask 162952
  %1282 = vst.msk [vmem:[#allocation3 + $0x10] sm:$0xff] %vm1281, %v1258
  %1283 = vst.msk [vmem:[#allocation3 + $0x18] sm:$0xff] %vm1281, %v1260
  %1284 = vst.msk [vmem:[#allocation3 + $0x20] sm:$0xff] %vm1281, %v1262
  %1285 = vst.msk [vmem:[#allocation3 + $0x28] sm:$0xff] %vm1281, %v1264
  %1286 = vst.msk [vmem:[#allocation3 + $0x30] sm:$0xff] %vm1281, %v1266
  %1287 = vst.msk [vmem:[#allocation3 + $0x38] sm:$0xff] %vm1281, %v1268
  %1288 = vst.msk [vmem:[#allocation3 + $0x40] sm:$0xff] %vm1281, %v1270
  %1289 = vst.msk [vmem:[#allocation3 + $0x48] sm:$0xff] %vm1281, %v1272
  %v1290 = vld [vmem:[#allocation2] sm:$0xff]
  %v1291 = vld [vmem:[#allocation2 + $0x8] sm:$0xff]
  %v1292 = vld [vmem:[#allocation2 + $0x10] sm:$0xff]
  %v1293 = vld [vmem:[#allocation2 + $0x18] sm:$0xff]
  %v1294 = vld [vmem:[#allocation2 + $0x20] sm:$0xff]
  %v1295 = vld [vmem:[#allocation2 + $0x28] sm:$0xff]
  %v1296 = vld [vmem:[#allocation2 + $0x30] sm:$0xff]
  %v1297 = vld [vmem:[#allocation2 + $0x38] sm:$0xff]
  %1306 = vrot.lane.b32.xlu0 %v1290, 14
  %v1307 = vpop.permute.xlu0 %1306
  %1308 = vrot.lane.b32.xlu0 %v1291, 14
  %v1309 = vpop.permute.xlu0 %1308
  %1310 = vrot.lane.b32.xlu0 %v1292, 14
  %v1311 = vpop.permute.xlu0 %1310
  %1312 = vrot.lane.b32.xlu0 %v1293, 14
  %v1313 = vpop.permute.xlu0 %1312
  %1314 = vrot.lane.b32.xlu0 %v1294, 14
  %v1315 = vpop.permute.xlu0 %1314
  %1316 = vrot.lane.b32.xlu0 %v1295, 14
  %v1317 = vpop.permute.xlu0 %1316
  %1318 = vrot.lane.b32.xlu0 %v1296, 14
  %v1319 = vpop.permute.xlu0 %1318
  %1320 = vrot.lane.b32.xlu0 %v1297, 14
  %v1321 = vpop.permute.xlu0 %1320
  %1330 = vst.msk [vmem:[#allocation3 + $0x60] sm:$0xff] %vm1281, %v1307
  %1331 = vst.msk [vmem:[#allocation3 + $0x68] sm:$0xff] %vm1281, %v1309
  %1332 = vst.msk [vmem:[#allocation3 + $0x70] sm:$0xff] %vm1281, %v1311
  %1333 = vst.msk [vmem:[#allocation3 + $0x78] sm:$0xff] %vm1281, %v1313
  %1334 = vst.msk [vmem:[#allocation3 + $0x80] sm:$0xff] %vm1281, %v1315
  %1335 = vst.msk [vmem:[#allocation3 + $0x88] sm:$0xff] %vm1281, %v1317
  %1336 = vst.msk [vmem:[#allocation3 + $0x90] sm:$0xff] %vm1281, %v1319
  %1337 = vst.msk [vmem:[#allocation3 + $0x98] sm:$0xff] %vm1281, %v1321
  %v1338 = vld [vmem:[#allocation3 + $0x6] sm:$0xff]
  %v1339 = vld [vmem:[#allocation3 + $0xe] sm:$0xff]
  %v1340 = vld [vmem:[#allocation3 + $0x16] sm:$0xff]
  %v1341 = vld [vmem:[#allocation3 + $0x1e] sm:$0xff]
  %v1342 = vld [vmem:[#allocation3 + $0x26] sm:$0xff]
  %v1343 = vld [vmem:[#allocation3 + $0x2e] sm:$0xff]
  %v1344 = vld [vmem:[#allocation3 + $0x36] sm:$0xff]
  %v1345 = vld [vmem:[#allocation3 + $0x3e] sm:$0xff]
  %v1346 = vld [vmem:[#allocation3 + $0x46] sm:$0xff]
  %v1347 = vld [vmem:[#allocation3 + $0x4e] sm:$0xff]
  %v1348 = vld [vmem:[#allocation3 + $0x56] sm:$0xff]
  %v1349 = vld [vmem:[#allocation3 + $0x5e] sm:$0xff]
  %v1350 = vld [vmem:[#allocation3 + $0x66] sm:$0xff]
  %v1351 = vld [vmem:[#allocation3 + $0x6e] sm:$0xff]
  %v1352 = vld [vmem:[#allocation3 + $0x76] sm:$0xff]
  %v1353 = vld [vmem:[#allocation3 + $0x7e] sm:$0xff]
  %v1354 = vld [vmem:[#allocation3 + $0x86] sm:$0xff]
  %v1355 = vld [vmem:[#allocation3 + $0x8e] sm:$0xff]
  %v1356 = vld [vmem:[#allocation3 + $0x96] sm:$0xff]
  %v1357 = vld [vmem:[#allocation3 + $0x9e] sm:$0xff]
  %v1358 = vld [vmem:[%s7] sm:$0xff]
  %v1359 = vld [vmem:[%s7 + $0x8] sm:$0xff]
  %v1360 = vld [vmem:[%s7 + $0x10] sm:$0xf]
  %v1361 = vld [vmem:[#allocation3 + $0x8] sm:$0xff]
  %v1362 = vld [vmem:[#allocation3 + $0x10] sm:$0xff]
  %v1363 = vld [vmem:[#allocation3 + $0x18] sm:$0xff]
  %v1364 = vld [vmem:[#allocation3 + $0x20] sm:$0xff]
  %v1365 = vld [vmem:[#allocation3 + $0x28] sm:$0xff]
  %v1366 = vld [vmem:[#allocation3 + $0x30] sm:$0xff]
  %v1367 = vld [vmem:[#allocation3 + $0x38] sm:$0xff]
  %v1368 = vld [vmem:[#allocation3 + $0x40] sm:$0xff]
  %v1369 = vld [vmem:[#allocation3 + $0x48] sm:$0xff]
  %v1370 = vld [vmem:[#allocation3 + $0x50] sm:$0xff]
  %v1371 = vld [vmem:[#allocation3 + $0x58] sm:$0xff]
  %v1372 = vld [vmem:[#allocation3 + $0x60] sm:$0xff]
  %v1373 = vld [vmem:[#allocation3 + $0x68] sm:$0xff]
  %v1374 = vld [vmem:[#allocation3 + $0x70] sm:$0xff]
  %v1375 = vld [vmem:[#allocation3 + $0x78] sm:$0xff]
  %v1376 = vld [vmem:[#allocation3 + $0x80] sm:$0xff]
  %v1377 = vld [vmem:[#allocation3 + $0x88] sm:$0xff]
  %v1378 = vld [vmem:[#allocation3 + $0x90] sm:$0xff]
  %v1379 = vld [vmem:[#allocation3 + $0x98] sm:$0xff]
  %v1380 = vld [vmem:[#allocation3 + $0xa0] sm:$0xff]
  %s1381 = scalar_lea.vmem %s7, 24
  %v1382 = vld [vmem:[%s1381] sm:$0xff]
  %v1383 = vld [vmem:[%s1381 + $0x8] sm:$0xff]
  %v1384 = vld [vmem:[%s1381 + $0x10] sm:$0xf]
  %v1386 = vsel %vm565, %v1361, 0
  %v1389 = vsel %vm565, %v1362, 0
  %v1392 = vsel %vm565, %v1363, 0
  %v1395 = vsel %vm565, %v1364, 0
  %v1398 = vsel %vm565, %v1365, 0
  %v1401 = vsel %vm565, %v1366, 0
  %v1404 = vsel %vm565, %v1367, 0
  %v1407 = vsel %vm565, %v1368, 0
  %v1410 = vsel %vm565, %v1369, 0
  %v1413 = vsel %vm565, %v1370, 0
  %v1416 = vsel %vm565, %v1371, 0
  %v1419 = vsel %vm565, %v1372, 0
  %v1422 = vsel %vm565, %v1373, 0
  %v1425 = vsel %vm565, %v1374, 0
  %v1428 = vsel %vm565, %v1375, 0
  %v1431 = vsel %vm565, %v1376, 0
  %v1434 = vsel %vm565, %v1377, 0
  %v1437 = vsel %vm565, %v1378, 0
  %v1440 = vsel %vm565, %v1379, 0
  %v1443 = vsel %vm565, %v1380, 0
  %vm1445 = vcmask 1043456
  %v1447 = vsel %vm1445, %v1384, 0
  %1449 = vmatpush.msra.mxu0 0.0
  %1450 = vmatpush.msra.mxu0 0.0
  %1451 = vmatpush.msra.mxu0 0.0
  %1452 = vmatpush.msra.mxu0 0.0
  %1453 = vmatpush.msra.mxu0 0.0
  %1454 = vmatpush.msra.mxu0 0.0
  %1455 = vmatpush.msra.mxu0 0.0
  %1456 = vmatpush.msra.mxu0 0.0
  %1457 = vmatpush.msra.mxu0 0.0
  %1458 = vmatpush.msra.mxu0 0.0
  %1459 = vmatpush.msra.mxu0 0.0
  %1460 = vmatpush.msra.mxu0 0.0
  %1461 = vmatpush.msra.mxu0 0.0
  %1462 = vmatpush.msra.mxu0 %v1447
  %1463 = vmatpush.msra.mxu0 %v1383
  %1464 = vmatpush.msra.mxu0 %v1382
  %1465 = vmatmul.f32.gmra.mxu0 %v1386
  %v1466 = vpop.f32.mrf.mxu0
  %1467 = vmatmul.f32.gmra.mxu0 %v1389
  %v1468 = vpop.f32.mrf.mxu0
  %v1469 = vadd.f32 0.0, %v1468
  %1470 = vmatmul.f32.gmra.mxu0 %v1392
  %v1471 = vpop.f32.mrf.mxu0
  %v1472 = vadd.f32 0.0, %v1471
  %1473 = vmatmul.f32.gmra.mxu0 %v1395
  %v1474 = vpop.f32.mrf.mxu0
  %v1475 = vadd.f32 0.0, %v1474
  %1476 = vmatmul.f32.gmra.mxu0 %v1398
  %v1477 = vpop.f32.mrf.mxu0
  %v1478 = vadd.f32 0.0, %v1477
  %1479 = vmatmul.f32.gmra.mxu0 %v1401
  %v1480 = vpop.f32.mrf.mxu0
  %v1481 = vadd.f32 0.0, %v1480
  %1482 = vmatmul.f32.gmra.mxu0 %v1404
  %v1483 = vpop.f32.mrf.mxu0
  %v1484 = vadd.f32 0.0, %v1483
  %1485 = vmatmul.f32.gmra.mxu0 %v1407
  %v1486 = vpop.f32.mrf.mxu0
  %v1487 = vadd.f32 0.0, %v1486
  %1488 = vmatmul.f32.gmra.mxu0 %v1410
  %v1489 = vpop.f32.mrf.mxu0
  %v1490 = vadd.f32 0.0, %v1489
  %1491 = vmatmul.f32.gmra.mxu0 %v1413
  %v1492 = vpop.f32.mrf.mxu0
  %1493 = vmatmul.f32.gmra.mxu0 %v1416
  %v1494 = vpop.f32.mrf.mxu0
  %1495 = vmatmul.f32.gmra.mxu0 %v1419
  %v1496 = vpop.f32.mrf.mxu0
  %v1497 = vadd.f32 0.0, %v1496
  %1498 = vmatmul.f32.gmra.mxu0 %v1422
  %v1499 = vpop.f32.mrf.mxu0
  %v1500 = vadd.f32 0.0, %v1499
  %1501 = vmatmul.f32.gmra.mxu0 %v1425
  %v1502 = vpop.f32.mrf.mxu0
  %v1503 = vadd.f32 0.0, %v1502
  %1504 = vmatmul.f32.gmra.mxu0 %v1428
  %v1505 = vpop.f32.mrf.mxu0
  %v1506 = vadd.f32 0.0, %v1505
  %1507 = vmatmul.f32.gmra.mxu0 %v1431
  %v1508 = vpop.f32.mrf.mxu0
  %v1509 = vadd.f32 0.0, %v1508
  %1510 = vmatmul.f32.gmra.mxu0 %v1434
  %v1511 = vpop.f32.mrf.mxu0
  %v1512 = vadd.f32 0.0, %v1511
  %1513 = vmatmul.f32.gmra.mxu0 %v1437
  %v1514 = vpop.f32.mrf.mxu0
  %v1515 = vadd.f32 0.0, %v1514
  %1516 = vmatmul.f32.gmra.mxu0 %v1440
  %v1517 = vpop.f32.mrf.mxu0
  %v1518 = vadd.f32 0.0, %v1517
  %1519 = vmatmul.f32.gmra.mxu0 %v1443
  %v1520 = vpop.f32.mrf.mxu0
  %1521 = vdwg.mxu0
  %v1523 = vsel %vm565, %v1338, 0
  %v1526 = vsel %vm565, %v1339, 0
  %v1529 = vsel %vm565, %v1340, 0
  %v1532 = vsel %vm565, %v1341, 0
  %v1535 = vsel %vm565, %v1342, 0
  %v1538 = vsel %vm565, %v1343, 0
  %v1541 = vsel %vm565, %v1344, 0
  %v1544 = vsel %vm565, %v1345, 0
  %v1547 = vsel %vm565, %v1346, 0
  %v1550 = vsel %vm565, %v1347, 0
  %v1553 = vsel %vm565, %v1348, 0
  %v1556 = vsel %vm565, %v1349, 0
  %v1559 = vsel %vm565, %v1350, 0
  %v1562 = vsel %vm565, %v1351, 0
  %v1565 = vsel %vm565, %v1352, 0
  %v1568 = vsel %vm565, %v1353, 0
  %v1571 = vsel %vm565, %v1354, 0
  %v1574 = vsel %vm565, %v1355, 0
  %v1577 = vsel %vm565, %v1356, 0
  %v1580 = vsel %vm565, %v1357, 0
  %v1583 = vsel %vm1445, %v1360, 0
  %1585 = vmatpush.msra.mxu0 0.0
  %1586 = vmatpush.msra.mxu0 0.0
  %1587 = vmatpush.msra.mxu0 0.0
  %1588 = vmatpush.msra.mxu0 0.0
  %1589 = vmatpush.msra.mxu0 0.0
  %1590 = vmatpush.msra.mxu0 0.0
  %1591 = vmatpush.msra.mxu0 0.0
  %1592 = vmatpush.msra.mxu0 0.0
  %1593 = vmatpush.msra.mxu0 0.0
  %1594 = vmatpush.msra.mxu0 0.0
  %1595 = vmatpush.msra.mxu0 0.0
  %1596 = vmatpush.msra.mxu0 0.0
  %1597 = vmatpush.msra.mxu0 0.0
  %1598 = vmatpush.msra.mxu0 %v1583
  %1599 = vmatpush.msra.mxu0 %v1359
  %1600 = vmatpush.msra.mxu0 %v1358
  %1601 = vmatmul.f32.gmra.mxu0 %v1523
  %v1602 = vpop.f32.mrf.mxu0
  %1603 = vmatmul.f32.gmra.mxu0 %v1526
  %v1604 = vpop.f32.mrf.mxu0
  %v1605 = vadd.f32 %v1469, %v1604
  %1606 = vmatmul.f32.gmra.mxu0 %v1529
  %v1607 = vpop.f32.mrf.mxu0
  %v1608 = vadd.f32 %v1472, %v1607
  %1609 = vmatmul.f32.gmra.mxu0 %v1532
  %v1610 = vpop.f32.mrf.mxu0
  %v1611 = vadd.f32 %v1475, %v1610
  %1612 = vmatmul.f32.gmra.mxu0 %v1535
  %v1613 = vpop.f32.mrf.mxu0
  %v1614 = vadd.f32 %v1478, %v1613
  %1615 = vmatmul.f32.gmra.mxu0 %v1538
  %v1616 = vpop.f32.mrf.mxu0
  %v1617 = vadd.f32 %v1481, %v1616
  %1618 = vmatmul.f32.gmra.mxu0 %v1541
  %v1619 = vpop.f32.mrf.mxu0
  %v1620 = vadd.f32 %v1484, %v1619
  %1621 = vmatmul.f32.gmra.mxu0 %v1544
  %v1622 = vpop.f32.mrf.mxu0
  %v1623 = vadd.f32 %v1487, %v1622
  %1624 = vmatmul.f32.gmra.mxu0 %v1547
  %v1625 = vpop.f32.mrf.mxu0
  %v1626 = vadd.f32 %v1490, %v1625
  %1627 = vmatmul.f32.gmra.mxu0 %v1550
  %v1628 = vpop.f32.mrf.mxu0
  %1629 = vmatmul.f32.gmra.mxu0 %v1553
  %v1630 = vpop.f32.mrf.mxu0
  %1631 = vmatmul.f32.gmra.mxu0 %v1556
  %v1632 = vpop.f32.mrf.mxu0
  %v1633 = vadd.f32 %v1497, %v1632
  %1634 = vmatmul.f32.gmra.mxu0 %v1559
  %v1635 = vpop.f32.mrf.mxu0
  %v1636 = vadd.f32 %v1500, %v1635
  %1637 = vmatmul.f32.gmra.mxu0 %v1562
  %v1638 = vpop.f32.mrf.mxu0
  %v1639 = vadd.f32 %v1503, %v1638
  %1640 = vmatmul.f32.gmra.mxu0 %v1565
  %v1641 = vpop.f32.mrf.mxu0
  %v1642 = vadd.f32 %v1506, %v1641
  %1643 = vmatmul.f32.gmra.mxu0 %v1568
  %v1644 = vpop.f32.mrf.mxu0
  %v1645 = vadd.f32 %v1509, %v1644
  %1646 = vmatmul.f32.gmra.mxu0 %v1571
  %v1647 = vpop.f32.mrf.mxu0
  %v1648 = vadd.f32 %v1512, %v1647
  %1649 = vmatmul.f32.gmra.mxu0 %v1574
  %v1650 = vpop.f32.mrf.mxu0
  %v1651 = vadd.f32 %v1515, %v1650
  %1652 = vmatmul.f32.gmra.mxu0 %v1577
  %v1653 = vpop.f32.mrf.mxu0
  %v1654 = vadd.f32 %v1518, %v1653
  %1655 = vmatmul.f32.gmra.mxu0 %v1580
  %v1656 = vpop.f32.mrf.mxu0
  %1657 = vdwg.mxu0
  %v1658 = vld [vmem:[#allocation3 + $0xa] sm:$0xff]
  %v1659 = vld [vmem:[#allocation3 + $0x12] sm:$0xff]
  %v1660 = vld [vmem:[#allocation3 + $0x1a] sm:$0xff]
  %v1661 = vld [vmem:[#allocation3 + $0x22] sm:$0xff]
  %v1662 = vld [vmem:[#allocation3 + $0x2a] sm:$0xff]
  %v1663 = vld [vmem:[#allocation3 + $0x32] sm:$0xff]
  %v1664 = vld [vmem:[#allocation3 + $0x3a] sm:$0xff]
  %v1665 = vld [vmem:[#allocation3 + $0x42] sm:$0xff]
  %v1666 = vld [vmem:[#allocation3 + $0x4a] sm:$0xff]
  %v1667 = vld [vmem:[#allocation3 + $0x52] sm:$0xff]
  %v1668 = vld [vmem:[#allocation3 + $0x5a] sm:$0xff]
  %v1669 = vld [vmem:[#allocation3 + $0x62] sm:$0xff]
  %v1670 = vld [vmem:[#allocation3 + $0x6a] sm:$0xff]
  %v1671 = vld [vmem:[#allocation3 + $0x72] sm:$0xff]
  %v1672 = vld [vmem:[#allocation3 + $0x7a] sm:$0xff]
  %v1673 = vld [vmem:[#allocation3 + $0x82] sm:$0xff]
  %v1674 = vld [vmem:[#allocation3 + $0x8a] sm:$0xff]
  %v1675 = vld [vmem:[#allocation3 + $0x92] sm:$0xff]
  %v1676 = vld [vmem:[#allocation3 + $0x9a] sm:$0xff]
  %v1677 = vld [vmem:[#allocation3 + $0xa2] sm:$0xff]
  %s1678 = scalar_lea.vmem %s7, 48
  %v1679 = vld [vmem:[%s1678] sm:$0xff]
  %v1680 = vld [vmem:[%s1678 + $0x8] sm:$0xff]
  %v1681 = vld [vmem:[%s1678 + $0x10] sm:$0xf]
  %v1683 = vsel %vm565, %v1658, 0
  %v1686 = vsel %vm565, %v1659, 0
  %v1689 = vsel %vm565, %v1660, 0
  %v1692 = vsel %vm565, %v1661, 0
  %v1695 = vsel %vm565, %v1662, 0
  %v1698 = vsel %vm565, %v1663, 0
  %v1701 = vsel %vm565, %v1664, 0
  %v1704 = vsel %vm565, %v1665, 0
  %v1707 = vsel %vm565, %v1666, 0
  %v1710 = vsel %vm565, %v1667, 0
  %v1713 = vsel %vm565, %v1668, 0
  %v1716 = vsel %vm565, %v1669, 0
  %v1719 = vsel %vm565, %v1670, 0
  %v1722 = vsel %vm565, %v1671, 0
  %v1725 = vsel %vm565, %v1672, 0
  %v1728 = vsel %vm565, %v1673, 0
  %v1731 = vsel %vm565, %v1674, 0
  %v1734 = vsel %vm565, %v1675, 0
  %v1737 = vsel %vm565, %v1676, 0
  %v1740 = vsel %vm565, %v1677, 0
  %v1743 = vsel %vm1445, %v1681, 0
  %1745 = vmatpush.msra.mxu0 0.0
  %1746 = vmatpush.msra.mxu0 0.0
  %1747 = vmatpush.msra.mxu0 0.0
  %1748 = vmatpush.msra.mxu0 0.0
  %1749 = vmatpush.msra.mxu0 0.0
  %1750 = vmatpush.msra.mxu0 0.0
  %1751 = vmatpush.msra.mxu0 0.0
  %1752 = vmatpush.msra.mxu0 0.0
  %1753 = vmatpush.msra.mxu0 0.0
  %1754 = vmatpush.msra.mxu0 0.0
  %1755 = vmatpush.msra.mxu0 0.0
  %1756 = vmatpush.msra.mxu0 0.0
  %1757 = vmatpush.msra.mxu0 0.0
  %1758 = vmatpush.msra.mxu0 %v1743
  %1759 = vmatpush.msra.mxu0 %v1680
  %1760 = vmatpush.msra.mxu0 %v1679
  %1761 = vmatmul.f32.gmra.mxu0 %v1683
  %v1762 = vpop.f32.mrf.mxu0
  %1763 = vmatmul.f32.gmra.mxu0 %v1686
  %v1764 = vpop.f32.mrf.mxu0
  %v1765 = vadd.f32 0.0, %v1764
  %1766 = vmatmul.f32.gmra.mxu0 %v1689
  %v1767 = vpop.f32.mrf.mxu0
  %v1768 = vadd.f32 0.0, %v1767
  %1769 = vmatmul.f32.gmra.mxu0 %v1692
  %v1770 = vpop.f32.mrf.mxu0
  %v1771 = vadd.f32 0.0, %v1770
  %1772 = vmatmul.f32.gmra.mxu0 %v1695
  %v1773 = vpop.f32.mrf.mxu0
  %v1774 = vadd.f32 0.0, %v1773
  %1775 = vmatmul.f32.gmra.mxu0 %v1698
  %v1776 = vpop.f32.mrf.mxu0
  %v1777 = vadd.f32 0.0, %v1776
  %1778 = vmatmul.f32.gmra.mxu0 %v1701
  %v1779 = vpop.f32.mrf.mxu0
  %v1780 = vadd.f32 0.0, %v1779
  %1781 = vmatmul.f32.gmra.mxu0 %v1704
  %v1782 = vpop.f32.mrf.mxu0
  %v1783 = vadd.f32 0.0, %v1782
  %1784 = vmatmul.f32.gmra.mxu0 %v1707
  %v1785 = vpop.f32.mrf.mxu0
  %v1786 = vadd.f32 0.0, %v1785
  %1787 = vmatmul.f32.gmra.mxu0 %v1710
  %v1788 = vpop.f32.mrf.mxu0
  %1789 = vmatmul.f32.gmra.mxu0 %v1713
  %v1790 = vpop.f32.mrf.mxu0
  %1791 = vmatmul.f32.gmra.mxu0 %v1716
  %v1792 = vpop.f32.mrf.mxu0
  %v1793 = vadd.f32 0.0, %v1792
  %1794 = vmatmul.f32.gmra.mxu0 %v1719
  %v1795 = vpop.f32.mrf.mxu0
  %v1796 = vadd.f32 0.0, %v1795
  %1797 = vmatmul.f32.gmra.mxu0 %v1722
  %v1798 = vpop.f32.mrf.mxu0
  %v1799 = vadd.f32 0.0, %v1798
  %1800 = vmatmul.f32.gmra.mxu0 %v1725
  %v1801 = vpop.f32.mrf.mxu0
  %v1802 = vadd.f32 0.0, %v1801
  %1803 = vmatmul.f32.gmra.mxu0 %v1728
  %v1804 = vpop.f32.mrf.mxu0
  %v1805 = vadd.f32 0.0, %v1804
  %1806 = vmatmul.f32.gmra.mxu0 %v1731
  %v1807 = vpop.f32.mrf.mxu0
  %v1808 = vadd.f32 0.0, %v1807
  %1809 = vmatmul.f32.gmra.mxu0 %v1734
  %v1810 = vpop.f32.mrf.mxu0
  %v1811 = vadd.f32 0.0, %v1810
  %1812 = vmatmul.f32.gmra.mxu0 %v1737
  %v1813 = vpop.f32.mrf.mxu0
  %v1814 = vadd.f32 0.0, %v1813
  %1815 = vmatmul.f32.gmra.mxu0 %v1740
  %v1816 = vpop.f32.mrf.mxu0
  %1817 = vdwg.mxu0
  %v1818 = vadd.f32 %v1605, %v1765
  %v1819 = vadd.f32 %v1608, %v1768
  %v1820 = vadd.f32 %v1611, %v1771
  %v1821 = vadd.f32 %v1614, %v1774
  %v1822 = vadd.f32 %v1617, %v1777
  %v1823 = vadd.f32 %v1620, %v1780
  %v1824 = vadd.f32 %v1623, %v1783
  %v1825 = vadd.f32 %v1626, %v1786
  %v1826 = vadd.f32 %v1633, %v1793
  %v1827 = vadd.f32 %v1636, %v1796
  %v1828 = vadd.f32 %v1639, %v1799
  %v1829 = vadd.f32 %v1642, %v1802
  %v1830 = vadd.f32 %v1645, %v1805
  %v1831 = vadd.f32 %v1648, %v1808
  %v1832 = vadd.f32 %v1651, %v1811
  %v1833 = vadd.f32 %v1654, %v1814
  %v1834 = vld [vmem:[%s0 + $0x7] sm:$0xff]
  %v1835 = vld [vmem:[%s0 + $0xf] sm:$0xff]
  %v1836 = vld [vmem:[%s0 + $0x17] sm:$0xff]
  %v1837 = vld [vmem:[%s0 + $0x1f] sm:$0xff]
  %v1838 = vld [vmem:[%s0 + $0x27] sm:$0xff]
  %v1839 = vld [vmem:[%s0 + $0x2f] sm:$0xff]
  %v1840 = vld [vmem:[%s0 + $0x37] sm:$0xff]
  %v1841 = vld [vmem:[%s0 + $0x3f] sm:$0xff]
  %v1842 = vld [vmem:[%s0 + $0x47] sm:$0xff]
  %v1843 = vld [vmem:[%s0 + $0x4f] sm:$0xff]
  %v1844 = vld [vmem:[%s0 + $0x57] sm:$0xff]
  %v1845 = vld [vmem:[%s0 + $0x5f] sm:$0xff]
  %v1846 = vld [vmem:[%s0 + $0x67] sm:$0xff]
  %v1847 = vld [vmem:[%s0 + $0x6f] sm:$0xff]
  %v1848 = vld [vmem:[%s0 + $0x77] sm:$0xff]
  %v1849 = vld [vmem:[%s0 + $0x7f] sm:$0xff]
  %v1850 = vld [vmem:[%s0 + $0x87] sm:$0xff]
  %v1851 = vld [vmem:[%s0 + $0x8f] sm:$0xff]
  %v1852 = vld [vmem:[%s0 + $0x97] sm:$0xff]
  %v1853 = vld [vmem:[%s0 + $0x9f] sm:$0xff]
  %v1854 = vld [vmem:[%s9] sm:$0xff]
  %v1855 = vld [vmem:[%s9 + $0x8] sm:$0xff]
  %vm1856 = vcmask 130048
  %v1858 = vsel %vm1856, %v1834, 0
  %v1861 = vsel %vm1856, %v1835, 0
  %v1864 = vsel %vm1856, %v1836, 0
  %v1867 = vsel %vm1856, %v1837, 0
  %v1870 = vsel %vm1856, %v1838, 0
  %v1873 = vsel %vm1856, %v1839, 0
  %v1876 = vsel %vm1856, %v1840, 0
  %v1879 = vsel %vm1856, %v1841, 0
  %v1882 = vsel %vm1856, %v1842, 0
  %v1885 = vsel %vm1856, %v1843, 0
  %v1888 = vsel %vm1856, %v1844, 0
  %v1891 = vsel %vm1856, %v1845, 0
  %v1894 = vsel %vm1856, %v1846, 0
  %v1897 = vsel %vm1856, %v1847, 0
  %v1900 = vsel %vm1856, %v1848, 0
  %v1903 = vsel %vm1856, %v1849, 0
  %v1906 = vsel %vm1856, %v1850, 0
  %v1909 = vsel %vm1856, %v1851, 0
  %v1912 = vsel %vm1856, %v1852, 0
  %v1915 = vsel %vm1856, %v1853, 0
  %1917 = vmatpush.msra.mxu0 0.0
  %1918 = vmatpush.msra.mxu0 0.0
  %1919 = vmatpush.msra.mxu0 0.0
  %1920 = vmatpush.msra.mxu0 0.0
  %1921 = vmatpush.msra.mxu0 0.0
  %1922 = vmatpush.msra.mxu0 0.0
  %1923 = vmatpush.msra.mxu0 0.0
  %1924 = vmatpush.msra.mxu0 0.0
  %1925 = vmatpush.msra.mxu0 0.0
  %1926 = vmatpush.msra.mxu0 0.0
  %1927 = vmatpush.msra.mxu0 0.0
  %1928 = vmatpush.msra.mxu0 0.0
  %1929 = vmatpush.msra.mxu0 0.0
  %1930 = vmatpush.msra.mxu0 0.0
  %1931 = vmatpush.msra.mxu0 %v1855
  %1932 = vmatpush.msra.mxu0 %v1854
  %1933 = vmatmul.f32.gmra.mxu0 %v1858
  %v1934 = vpop.f32.mrf.mxu0
  %1935 = vmatmul.f32.gmra.mxu0 %v1861
  %v1936 = vpop.f32.mrf.mxu0
  %v1937 = vadd.f32 0.0, %v1936
  %1938 = vmatmul.f32.gmra.mxu0 %v1864
  %v1939 = vpop.f32.mrf.mxu0
  %v1940 = vadd.f32 0.0, %v1939
  %1941 = vmatmul.f32.gmra.mxu0 %v1867
  %v1942 = vpop.f32.mrf.mxu0
  %v1943 = vadd.f32 0.0, %v1942
  %1944 = vmatmul.f32.gmra.mxu0 %v1870
  %v1945 = vpop.f32.mrf.mxu0
  %v1946 = vadd.f32 0.0, %v1945
  %1947 = vmatmul.f32.gmra.mxu0 %v1873
  %v1948 = vpop.f32.mrf.mxu0
  %v1949 = vadd.f32 0.0, %v1948
  %1950 = vmatmul.f32.gmra.mxu0 %v1876
  %v1951 = vpop.f32.mrf.mxu0
  %v1952 = vadd.f32 0.0, %v1951
  %1953 = vmatmul.f32.gmra.mxu0 %v1879
  %v1954 = vpop.f32.mrf.mxu0
  %v1955 = vadd.f32 0.0, %v1954
  %1956 = vmatmul.f32.gmra.mxu0 %v1882
  %v1957 = vpop.f32.mrf.mxu0
  %v1958 = vadd.f32 0.0, %v1957
  %1959 = vmatmul.f32.gmra.mxu0 %v1885
  %v1960 = vpop.f32.mrf.mxu0
  %1961 = vmatmul.f32.gmra.mxu0 %v1888
  %v1962 = vpop.f32.mrf.mxu0
  %1963 = vmatmul.f32.gmra.mxu0 %v1891
  %v1964 = vpop.f32.mrf.mxu0
  %v1965 = vadd.f32 0.0, %v1964
  %1966 = vmatmul.f32.gmra.mxu0 %v1894
  %v1967 = vpop.f32.mrf.mxu0
  %v1968 = vadd.f32 0.0, %v1967
  %1969 = vmatmul.f32.gmra.mxu0 %v1897
  %v1970 = vpop.f32.mrf.mxu0
  %v1971 = vadd.f32 0.0, %v1970
  %1972 = vmatmul.f32.gmra.mxu0 %v1900
  %v1973 = vpop.f32.mrf.mxu0
  %v1974 = vadd.f32 0.0, %v1973
  %1975 = vmatmul.f32.gmra.mxu0 %v1903
  %v1976 = vpop.f32.mrf.mxu0
  %v1977 = vadd.f32 0.0, %v1976
  %1978 = vmatmul.f32.gmra.mxu0 %v1906
  %v1979 = vpop.f32.mrf.mxu0
  %v1980 = vadd.f32 0.0, %v1979
  %1981 = vmatmul.f32.gmra.mxu0 %v1909
  %v1982 = vpop.f32.mrf.mxu0
  %v1983 = vadd.f32 0.0, %v1982
  %1984 = vmatmul.f32.gmra.mxu0 %v1912
  %v1985 = vpop.f32.mrf.mxu0
  %v1986 = vadd.f32 0.0, %v1985
  %1987 = vmatmul.f32.gmra.mxu0 %v1915
  %v1988 = vpop.f32.mrf.mxu0
  %1989 = vdwg.mxu0
  %v1990 = vadd.f32 %v1818, %v1937
  %v1991 = vadd.f32 %v1819, %v1940
  %v1992 = vadd.f32 %v1820, %v1943
  %v1993 = vadd.f32 %v1821, %v1946
  %v1994 = vadd.f32 %v1822, %v1949
  %v1995 = vadd.f32 %v1823, %v1952
  %v1996 = vadd.f32 %v1824, %v1955
  %v1997 = vadd.f32 %v1825, %v1958
  %v1998 = vadd.f32 %v1826, %v1965
  %v1999 = vadd.f32 %v1827, %v1968
  %v2000 = vadd.f32 %v1828, %v1971
  %v2001 = vadd.f32 %v1829, %v1974
  %v2002 = vadd.f32 %v1830, %v1977
  %v2003 = vadd.f32 %v1831, %v1980
  %v2004 = vadd.f32 %v1832, %v1983
  %v2005 = vadd.f32 %v1833, %v1986
  %v2006 = vld [vmem:[%s0 + $0x8] sm:$0xff]
  %v2007 = vld [vmem:[%s0 + $0x10] sm:$0xff]
  %v2008 = vld [vmem:[%s0 + $0x18] sm:$0xff]
  %v2009 = vld [vmem:[%s0 + $0x20] sm:$0xff]
  %v2010 = vld [vmem:[%s0 + $0x28] sm:$0xff]
  %v2011 = vld [vmem:[%s0 + $0x30] sm:$0xff]
  %v2012 = vld [vmem:[%s0 + $0x38] sm:$0xff]
  %v2013 = vld [vmem:[%s0 + $0x40] sm:$0xff]
  %v2014 = vld [vmem:[%s0 + $0x48] sm:$0xff]
  %v2015 = vld [vmem:[%s0 + $0x50] sm:$0xff]
  %v2016 = vld [vmem:[%s0 + $0x58] sm:$0xff]
  %v2017 = vld [vmem:[%s0 + $0x60] sm:$0xff]
  %v2018 = vld [vmem:[%s0 + $0x68] sm:$0xff]
  %v2019 = vld [vmem:[%s0 + $0x70] sm:$0xff]
  %v2020 = vld [vmem:[%s0 + $0x78] sm:$0xff]
  %v2021 = vld [vmem:[%s0 + $0x80] sm:$0xff]
  %v2022 = vld [vmem:[%s0 + $0x88] sm:$0xff]
  %v2023 = vld [vmem:[%s0 + $0x90] sm:$0xff]
  %v2024 = vld [vmem:[%s0 + $0x98] sm:$0xff]
  %v2025 = vld [vmem:[%s0 + $0xa0] sm:$0xff]
  %s2026 = scalar_lea.vmem %s9, 16
  %v2027 = vld [vmem:[%s2026] sm:$0xff]
  %v2028 = vld [vmem:[%s2026 + $0x8] sm:$0xff]
  %v2030 = vsel %vm1856, %v2006, 0
  %v2033 = vsel %vm1856, %v2007, 0
  %v2036 = vsel %vm1856, %v2008, 0
  %v2039 = vsel %vm1856, %v2009, 0
  %v2042 = vsel %vm1856, %v2010, 0
  %v2045 = vsel %vm1856, %v2011, 0
  %v2048 = vsel %vm1856, %v2012, 0
  %v2051 = vsel %vm1856, %v2013, 0
  %v2054 = vsel %vm1856, %v2014, 0
  %v2057 = vsel %vm1856, %v2015, 0
  %v2060 = vsel %vm1856, %v2016, 0
  %v2063 = vsel %vm1856, %v2017, 0
  %v2066 = vsel %vm1856, %v2018, 0
  %v2069 = vsel %vm1856, %v2019, 0
  %v2072 = vsel %vm1856, %v2020, 0
  %v2075 = vsel %vm1856, %v2021, 0
  %v2078 = vsel %vm1856, %v2022, 0
  %v2081 = vsel %vm1856, %v2023, 0
  %v2084 = vsel %vm1856, %v2024, 0
  %v2087 = vsel %vm1856, %v2025, 0
  %2089 = vmatpush.msra.mxu0 0.0
  %2090 = vmatpush.msra.mxu0 0.0
  %2091 = vmatpush.msra.mxu0 0.0
  %2092 = vmatpush.msra.mxu0 0.0
  %2093 = vmatpush.msra.mxu0 0.0
  %2094 = vmatpush.msra.mxu0 0.0
  %2095 = vmatpush.msra.mxu0 0.0
  %2096 = vmatpush.msra.mxu0 0.0
  %2097 = vmatpush.msra.mxu0 0.0
  %2098 = vmatpush.msra.mxu0 0.0
  %2099 = vmatpush.msra.mxu0 0.0
  %2100 = vmatpush.msra.mxu0 0.0
  %2101 = vmatpush.msra.mxu0 0.0
  %2102 = vmatpush.msra.mxu0 0.0
  %2103 = vmatpush.msra.mxu0 %v2028
  %2104 = vmatpush.msra.mxu0 %v2027
  %2105 = vmatmul.f32.gmra.mxu0 %v2030
  %v2106 = vpop.f32.mrf.mxu0
  %2107 = vmatmul.f32.gmra.mxu0 %v2033
  %v2108 = vpop.f32.mrf.mxu0
  %v2109 = vadd.f32 0.0, %v2108
  %2110 = vmatmul.f32.gmra.mxu0 %v2036
  %v2111 = vpop.f32.mrf.mxu0
  %v2112 = vadd.f32 0.0, %v2111
  %2113 = vmatmul.f32.gmra.mxu0 %v2039
  %v2114 = vpop.f32.mrf.mxu0
  %v2115 = vadd.f32 0.0, %v2114
  %2116 = vmatmul.f32.gmra.mxu0 %v2042
  %v2117 = vpop.f32.mrf.mxu0
  %v2118 = vadd.f32 0.0, %v2117
  %2119 = vmatmul.f32.gmra.mxu0 %v2045
  %v2120 = vpop.f32.mrf.mxu0
  %v2121 = vadd.f32 0.0, %v2120
  %2122 = vmatmul.f32.gmra.mxu0 %v2048
  %v2123 = vpop.f32.mrf.mxu0
  %v2124 = vadd.f32 0.0, %v2123
  %2125 = vmatmul.f32.gmra.mxu0 %v2051
  %v2126 = vpop.f32.mrf.mxu0
  %v2127 = vadd.f32 0.0, %v2126
  %2128 = vmatmul.f32.gmra.mxu0 %v2054
  %v2129 = vpop.f32.mrf.mxu0
  %v2130 = vadd.f32 0.0, %v2129
  %2131 = vmatmul.f32.gmra.mxu0 %v2057
  %v2132 = vpop.f32.mrf.mxu0
  %2133 = vmatmul.f32.gmra.mxu0 %v2060
  %v2134 = vpop.f32.mrf.mxu0
  %2135 = vmatmul.f32.gmra.mxu0 %v2063
  %v2136 = vpop.f32.mrf.mxu0
  %v2137 = vadd.f32 0.0, %v2136
  %2138 = vmatmul.f32.gmra.mxu0 %v2066
  %v2139 = vpop.f32.mrf.mxu0
  %v2140 = vadd.f32 0.0, %v2139
  %2141 = vmatmul.f32.gmra.mxu0 %v2069
  %v2142 = vpop.f32.mrf.mxu0
  %v2143 = vadd.f32 0.0, %v2142
  %2144 = vmatmul.f32.gmra.mxu0 %v2072
  %v2145 = vpop.f32.mrf.mxu0
  %v2146 = vadd.f32 0.0, %v2145
  %2147 = vmatmul.f32.gmra.mxu0 %v2075
  %v2148 = vpop.f32.mrf.mxu0
  %v2149 = vadd.f32 0.0, %v2148
  %2150 = vmatmul.f32.gmra.mxu0 %v2078
  %v2151 = vpop.f32.mrf.mxu0
  %v2152 = vadd.f32 0.0, %v2151
  %2153 = vmatmul.f32.gmra.mxu0 %v2081
  %v2154 = vpop.f32.mrf.mxu0
  %v2155 = vadd.f32 0.0, %v2154
  %2156 = vmatmul.f32.gmra.mxu0 %v2084
  %v2157 = vpop.f32.mrf.mxu0
  %v2158 = vadd.f32 0.0, %v2157
  %2159 = vmatmul.f32.gmra.mxu0 %v2087
  %v2160 = vpop.f32.mrf.mxu0
  %2161 = vdwg.mxu0
  %v2162 = vadd.f32 %v1990, %v2109
  %v2163 = vadd.f32 %v1991, %v2112
  %v2164 = vadd.f32 %v1992, %v2115
  %v2165 = vadd.f32 %v1993, %v2118
  %v2166 = vadd.f32 %v1994, %v2121
  %v2167 = vadd.f32 %v1995, %v2124
  %v2168 = vadd.f32 %v1996, %v2127
  %v2169 = vadd.f32 %v1997, %v2130
  %v2170 = vadd.f32 %v1998, %v2137
  %v2171 = vadd.f32 %v1999, %v2140
  %v2172 = vadd.f32 %v2000, %v2143
  %v2173 = vadd.f32 %v2001, %v2146
  %v2174 = vadd.f32 %v2002, %v2149
  %v2175 = vadd.f32 %v2003, %v2152
  %v2176 = vadd.f32 %v2004, %v2155
  %v2177 = vadd.f32 %v2005, %v2158
  %v2178 = vld [vmem:[%s0 + $0x9] sm:$0xff]
  %v2179 = vld [vmem:[%s0 + $0x11] sm:$0xff]
  %v2180 = vld [vmem:[%s0 + $0x19] sm:$0xff]
  %v2181 = vld [vmem:[%s0 + $0x21] sm:$0xff]
  %v2182 = vld [vmem:[%s0 + $0x29] sm:$0xff]
  %v2183 = vld [vmem:[%s0 + $0x31] sm:$0xff]
  %v2184 = vld [vmem:[%s0 + $0x39] sm:$0xff]
  %v2185 = vld [vmem:[%s0 + $0x41] sm:$0xff]
  %v2186 = vld [vmem:[%s0 + $0x49] sm:$0xff]
  %v2187 = vld [vmem:[%s0 + $0x51] sm:$0xff]
  %v2188 = vld [vmem:[%s0 + $0x59] sm:$0xff]
  %v2189 = vld [vmem:[%s0 + $0x61] sm:$0xff]
  %v2190 = vld [vmem:[%s0 + $0x69] sm:$0xff]
  %v2191 = vld [vmem:[%s0 + $0x71] sm:$0xff]
  %v2192 = vld [vmem:[%s0 + $0x79] sm:$0xff]
  %v2193 = vld [vmem:[%s0 + $0x81] sm:$0xff]
  %v2194 = vld [vmem:[%s0 + $0x89] sm:$0xff]
  %v2195 = vld [vmem:[%s0 + $0x91] sm:$0xff]
  %v2196 = vld [vmem:[%s0 + $0x99] sm:$0xff]
  %v2197 = vld [vmem:[%s0 + $0xa1] sm:$0xff]
  %s2198 = scalar_lea.vmem %s9, 32
  %v2199 = vld [vmem:[%s2198] sm:$0xff]
  %v2200 = vld [vmem:[%s2198 + $0x8] sm:$0xff]
  %v2202 = vsel %vm1856, %v2178, 0
  %v2205 = vsel %vm1856, %v2179, 0
  %v2208 = vsel %vm1856, %v2180, 0
  %v2211 = vsel %vm1856, %v2181, 0
  %v2214 = vsel %vm1856, %v2182, 0
  %v2217 = vsel %vm1856, %v2183, 0
  %v2220 = vsel %vm1856, %v2184, 0
  %v2223 = vsel %vm1856, %v2185, 0
  %v2226 = vsel %vm1856, %v2186, 0
  %v2229 = vsel %vm1856, %v2187, 0
  %v2232 = vsel %vm1856, %v2188, 0
  %v2235 = vsel %vm1856, %v2189, 0
  %v2238 = vsel %vm1856, %v2190, 0
  %v2241 = vsel %vm1856, %v2191, 0
  %v2244 = vsel %vm1856, %v2192, 0
  %v2247 = vsel %vm1856, %v2193, 0
  %v2250 = vsel %vm1856, %v2194, 0
  %v2253 = vsel %vm1856, %v2195, 0
  %v2256 = vsel %vm1856, %v2196, 0
  %v2259 = vsel %vm1856, %v2197, 0
  %2261 = vmatpush.msra.mxu0 0.0
  %2262 = vmatpush.msra.mxu0 0.0
  %2263 = vmatpush.msra.mxu0 0.0
  %2264 = vmatpush.msra.mxu0 0.0
  %2265 = vmatpush.msra.mxu0 0.0
  %2266 = vmatpush.msra.mxu0 0.0
  %2267 = vmatpush.msra.mxu0 0.0
  %2268 = vmatpush.msra.mxu0 0.0
  %2269 = vmatpush.msra.mxu0 0.0
  %2270 = vmatpush.msra.mxu0 0.0
  %2271 = vmatpush.msra.mxu0 0.0
  %2272 = vmatpush.msra.mxu0 0.0
  %2273 = vmatpush.msra.mxu0 0.0
  %2274 = vmatpush.msra.mxu0 0.0
  %2275 = vmatpush.msra.mxu0 %v2200
  %2276 = vmatpush.msra.mxu0 %v2199
  %2277 = vmatmul.f32.gmra.mxu0 %v2202
  %v2278 = vpop.f32.mrf.mxu0
  %2279 = vmatmul.f32.gmra.mxu0 %v2205
  %v2280 = vpop.f32.mrf.mxu0
  %v2281 = vadd.f32 0.0, %v2280
  %2282 = vmatmul.f32.gmra.mxu0 %v2208
  %v2283 = vpop.f32.mrf.mxu0
  %v2284 = vadd.f32 0.0, %v2283
  %2285 = vmatmul.f32.gmra.mxu0 %v2211
  %v2286 = vpop.f32.mrf.mxu0
  %v2287 = vadd.f32 0.0, %v2286
  %2288 = vmatmul.f32.gmra.mxu0 %v2214
  %v2289 = vpop.f32.mrf.mxu0
  %v2290 = vadd.f32 0.0, %v2289
  %2291 = vmatmul.f32.gmra.mxu0 %v2217
  %v2292 = vpop.f32.mrf.mxu0
  %v2293 = vadd.f32 0.0, %v2292
  %2294 = vmatmul.f32.gmra.mxu0 %v2220
  %v2295 = vpop.f32.mrf.mxu0
  %v2296 = vadd.f32 0.0, %v2295
  %2297 = vmatmul.f32.gmra.mxu0 %v2223
  %v2298 = vpop.f32.mrf.mxu0
  %v2299 = vadd.f32 0.0, %v2298
  %2300 = vmatmul.f32.gmra.mxu0 %v2226
  %v2301 = vpop.f32.mrf.mxu0
  %v2302 = vadd.f32 0.0, %v2301
  %2303 = vmatmul.f32.gmra.mxu0 %v2229
  %v2304 = vpop.f32.mrf.mxu0
  %2305 = vmatmul.f32.gmra.mxu0 %v2232
  %v2306 = vpop.f32.mrf.mxu0
  %2307 = vmatmul.f32.gmra.mxu0 %v2235
  %v2308 = vpop.f32.mrf.mxu0
  %v2309 = vadd.f32 0.0, %v2308
  %2310 = vmatmul.f32.gmra.mxu0 %v2238
  %v2311 = vpop.f32.mrf.mxu0
  %v2312 = vadd.f32 0.0, %v2311
  %2313 = vmatmul.f32.gmra.mxu0 %v2241
  %v2314 = vpop.f32.mrf.mxu0
  %v2315 = vadd.f32 0.0, %v2314
  %2316 = vmatmul.f32.gmra.mxu0 %v2244
  %v2317 = vpop.f32.mrf.mxu0
  %v2318 = vadd.f32 0.0, %v2317
  %2319 = vmatmul.f32.gmra.mxu0 %v2247
  %v2320 = vpop.f32.mrf.mxu0
  %v2321 = vadd.f32 0.0, %v2320
  %2322 = vmatmul.f32.gmra.mxu0 %v2250
  %v2323 = vpop.f32.mrf.mxu0
  %v2324 = vadd.f32 0.0, %v2323
  %2325 = vmatmul.f32.gmra.mxu0 %v2253
  %v2326 = vpop.f32.mrf.mxu0
  %v2327 = vadd.f32 0.0, %v2326
  %2328 = vmatmul.f32.gmra.mxu0 %v2256
  %v2329 = vpop.f32.mrf.mxu0
  %v2330 = vadd.f32 0.0, %v2329
  %2331 = vmatmul.f32.gmra.mxu0 %v2259
  %v2332 = vpop.f32.mrf.mxu0
  %2333 = vdwg.mxu0
  %v2334 = vadd.f32 %v2162, %v2281
  %v2335 = vadd.f32 %v2163, %v2284
  %v2336 = vadd.f32 %v2164, %v2287
  %v2337 = vadd.f32 %v2165, %v2290
  %v2338 = vadd.f32 %v2166, %v2293
  %v2339 = vadd.f32 %v2167, %v2296
  %v2340 = vadd.f32 %v2168, %v2299
  %v2341 = vadd.f32 %v2169, %v2302
  %v2342 = vadd.f32 %v2170, %v2309
  %v2343 = vadd.f32 %v2171, %v2312
  %v2344 = vadd.f32 %v2172, %v2315
  %v2345 = vadd.f32 %v2173, %v2318
  %v2346 = vadd.f32 %v2174, %v2321
  %v2347 = vadd.f32 %v2175, %v2324
  %v2348 = vadd.f32 %v2176, %v2327
  %v2349 = vadd.f32 %v2177, %v2330
  %v2350 = vld [vmem:[%s8] sm:$0x1]
  %v2352 = vperm.slane %v2350, 0
  %v2354 = vadd.f32 %v2334, %v2352
  %v2355 = vadd.f32 %v2335, %v2352
  %v2356 = vadd.f32 %v2336, %v2352
  %v2357 = vadd.f32 %v2337, %v2352
  %v2358 = vadd.f32 %v2338, %v2352
  %v2359 = vadd.f32 %v2339, %v2352
  %v2360 = vadd.f32 %v2340, %v2352
  %v2361 = vadd.f32 %v2341, %v2352
  %v2362 = vadd.f32 %v2342, %v2352
  %v2363 = vadd.f32 %v2343, %v2352
  %v2364 = vadd.f32 %v2344, %v2352
  %v2365 = vadd.f32 %v2345, %v2352
  %v2366 = vadd.f32 %v2346, %v2352
  %v2367 = vadd.f32 %v2347, %v2352
  %v2368 = vadd.f32 %v2348, %v2352
  %v2369 = vadd.f32 %v2349, %v2352
  %v2370 = vmax.f32 %v2354, 0.0
  %v2371 = vmax.f32 %v2355, 0.0
  %v2372 = vmax.f32 %v2356, 0.0
  %v2373 = vmax.f32 %v2357, 0.0
  %v2374 = vmax.f32 %v2358, 0.0
  %v2375 = vmax.f32 %v2359, 0.0
  %v2376 = vmax.f32 %v2360, 0.0
  %v2377 = vmax.f32 %v2361, 0.0
  %vm2378 = vcmask 195584
  %2379 = vst.msk [vmem:[%s10] sm:$0xff] %vm2378, %v2370
  %2380 = vst.msk [vmem:[%s10 + $0x8] sm:$0xff] %vm2378, %v2371
  %2381 = vst.msk [vmem:[%s10 + $0x10] sm:$0xff] %vm2378, %v2372
  %2382 = vst.msk [vmem:[%s10 + $0x18] sm:$0xff] %vm2378, %v2373
  %2383 = vst.msk [vmem:[%s10 + $0x20] sm:$0xff] %vm2378, %v2374
  %2384 = vst.msk [vmem:[%s10 + $0x28] sm:$0xff] %vm2378, %v2375
  %2385 = vst.msk [vmem:[%s10 + $0x30] sm:$0xff] %vm2378, %v2376
  %2386 = vst.msk [vmem:[%s10 + $0x38] sm:$0xff] %vm2378, %v2377
  %v2387 = vmax.f32 %v2362, 0.0
  %v2388 = vmax.f32 %v2363, 0.0
  %v2389 = vmax.f32 %v2364, 0.0
  %v2390 = vmax.f32 %v2365, 0.0
  %v2391 = vmax.f32 %v2366, 0.0
  %v2392 = vmax.f32 %v2367, 0.0
  %v2393 = vmax.f32 %v2368, 0.0
  %v2394 = vmax.f32 %v2369, 0.0
  %2395 = vst.msk [vmem:[%s10 + $0x40] sm:$0xff] %vm2378, %v2387
  %2396 = vst.msk [vmem:[%s10 + $0x48] sm:$0xff] %vm2378, %v2388
  %2397 = vst.msk [vmem:[%s10 + $0x50] sm:$0xff] %vm2378, %v2389
  %2398 = vst.msk [vmem:[%s10 + $0x58] sm:$0xff] %vm2378, %v2390
  %2399 = vst.msk [vmem:[%s10 + $0x60] sm:$0xff] %vm2378, %v2391
  %2400 = vst.msk [vmem:[%s10 + $0x68] sm:$0xff] %vm2378, %v2392
  %2401 = vst.msk [vmem:[%s10 + $0x70] sm:$0xff] %vm2378, %v2393
  %2402 = vst.msk [vmem:[%s10 + $0x78] sm:$0xff] %vm2378, %v2394
  // Predicated region
  $region49: #{cnn_block_forward.1} parent=0 // pred_check
    _
  $region50: #{cnn_block_forward.1} parent=0 // pred_check_branch
    %2404 = sbr.rel (0) target = $region52
  $region51: #{cnn_block_forward.1} parent=0 // pred_region
    _
  $region52: #{cnn_block_forward.1} parent=0 // pred_fallthru
    _
  // Predicated region
  $region53: #{cnn_block_forward.1} parent=0 // pred_check
    _
  $region54: #{cnn_block_forward.1} parent=0 // pred_check_branch
    %2406 = sbr.rel (0) target = $region56
  $region55: #{cnn_block_forward.1} parent=0 // pred_region
    _
  $region56: #{cnn_block_forward.1} parent=0 // pred_fallthru
    _

</llo_original>
